<compile_context>
chip_gen: v7x
topology: tpu7x:2x2x1
jax: 0.10.0
libtpu: 0.0.40
codegen_flags: <defaults>
</compile_context>

<pallas_src>
import functools

import jax
import jax.numpy as jnp
from jax.experimental import pallas as pl
from jax.experimental.pallas import tpu as pltpu

EPS = 1e-5


def _round_up(n, m):
    return ((n + m - 1) // m) * m


def _layernorm(x, gamma, beta):
    # One-pass LayerNorm over the last dim (nn.LayerNorm defaults, eps=1e-5, affine).
    # gamma/beta are (1, D) -> broadcast over rows with no reshape/relayout.
    d = x.shape[-1]
    inv_d = 1.0 / d
    s1 = jnp.sum(x, axis=-1, keepdims=True)
    s2 = jnp.sum(x * x, axis=-1, keepdims=True)
    mean = s1 * inv_d
    var = jnp.maximum(s2 * inv_d - mean * mean, 0.0)   # clamp tiny negative cancellation
    inv = jax.lax.rsqrt(var + EPS)                     # EUP slot -> effectively free
    return (x - mean) * (inv * gamma) + beta


def encoder_mlp_kernel(
    in_dim, use_bf16,
    xp_ref,
    # encode_position params
    ep_w1_ref, ep_b1_ref, ep_g1_ref, ep_be1_ref,
    ep_w2_ref, ep_b2_ref, ep_g2_ref, ep_be2_ref,
    # fc_block params (fc_w1 pre-split into x-half / y-half to avoid in-kernel concat)
    fc_w1x_ref, fc_w1y_ref, fc_b1_ref, fc_g1_ref, fc_be1_ref,
    fc_w2_ref, fc_b2_ref, fc_g2_ref, fc_be2_ref,
    fc_w3_ref, fc_b3_ref,
    out_ref,
):
    def mm(a, b):
        if use_bf16:
            a = a.astype(jnp.bfloat16)
            b = b.astype(jnp.bfloat16)
        return jnp.dot(a, b, preferred_element_type=jnp.float32)

    xp = xp_ref[...]                 # (TB, in_dim + pt_dim)  merged activation block
    x = xp[:, :in_dim]               # (TB, in_dim)
    pt = xp[:, in_dim:]              # (TB, pt_dim)
    pt_dim = pt.shape[-1]

    # --- encode_position: Linear -> LN -> ReLU -> Linear -> LN -> ReLU ---------------
    # K = pt_dim (=3) contraction: do it on the VPU as broadcast FMAs, skip the MXU.
    w1 = ep_w1_ref[...]              # (pt_dim, in_dim)
    y = pt[:, 0:1] * w1[0:1, :]
    for k in range(1, pt_dim):       # static unroll (pt_dim is compile-time)
        y = y + pt[:, k:k + 1] * w1[k:k + 1, :]
    y = y + ep_b1_ref[...]
    y = jnp.maximum(_layernorm(y, ep_g1_ref[...], ep_be1_ref[...]), 0.0)

    y = mm(y, ep_w2_ref[...]) + ep_b2_ref[...]
    y = jnp.maximum(_layernorm(y, ep_g2_ref[...], ep_be2_ref[...]), 0.0)

    # --- fc_block: Linear -> LN -> ReLU -> Linear -> LN -> ReLU -> Linear -------------
    # cat([x, y], -1) @ W1  ==  x @ W1[:in_dim] + y @ W1[in_dim:]   (no lane-dim concat)
    h = mm(x, fc_w1x_ref[...]) + mm(y, fc_w1y_ref[...]) + fc_b1_ref[...]
    h = jnp.maximum(_layernorm(h, fc_g1_ref[...], fc_be1_ref[...]), 0.0)

    h = mm(h, fc_w2_ref[...]) + fc_b2_ref[...]
    h = jnp.maximum(_layernorm(h, fc_g2_ref[...], fc_be2_ref[...]), 0.0)

    h = mm(h, fc_w3_ref[...]) + fc_b3_ref[...]
    out_ref[...] = h.astype(out_ref.dtype)


def init_params(key, in_dim, out_dim, pt_dim=3):
    """Deterministic synthetic parameters.

    Linear weights stored as (in, out); all 1-D params stored as (1, N).
    """
    d6 = 2 * out_dim
    d5 = 2 * in_dim  # uses_pt=True

    keys = jax.random.split(key, 10)

    def lin(k, fan_in, fan_out):
        bound = 1.0 / jnp.sqrt(fan_in)
        kw, kb = jax.random.split(k)
        w = jax.random.uniform(kw, (fan_in, fan_out), jnp.float32, -bound, bound)
        b = jax.random.uniform(kb, (1, fan_out), jnp.float32, -bound, bound)
        return w, b

    def ln(dim):
        return jnp.ones((1, dim), jnp.float32), jnp.zeros((1, dim), jnp.float32)

    params = {}
    params["ep_w1"], params["ep_b1"] = lin(keys[0], pt_dim, in_dim)
    params["ep_g1"], params["ep_be1"] = ln(in_dim)
    params["ep_w2"], params["ep_b2"] = lin(keys[1], in_dim, in_dim)
    params["ep_g2"], params["ep_be2"] = ln(in_dim)

    params["fc_w1"], params["fc_b1"] = lin(keys[2], d5, d6)
    params["fc_g1"], params["fc_be1"] = ln(d6)
    params["fc_w2"], params["fc_b2"] = lin(keys[3], d6, d6)
    params["fc_g2"], params["fc_be2"] = ln(d6)
    params["fc_w3"], params["fc_b3"] = lin(keys[4], d6, out_dim)
    return params


def prepare_weights(params, in_dim):
    """One-time weight preprocessing (hoisted out of the per-call forward path):
    split fc_w1 into its x-half / y-half so the kernel never concatenates along lanes."""
    return (
        params["ep_w1"], params["ep_b1"], params["ep_g1"], params["ep_be1"],
        params["ep_w2"], params["ep_b2"], params["ep_g2"], params["ep_be2"],
        params["fc_w1"][:in_dim], params["fc_w1"][in_dim:],
        params["fc_b1"], params["fc_g1"], params["fc_be1"],
        params["fc_w2"], params["fc_b2"], params["fc_g2"], params["fc_be2"],
        params["fc_w3"], params["fc_b3"],
    )


def _pick_tile_b(B, max_tile=1024):
    """Adaptive batch tile:
       - tiny B: one tile of round_up(B, 8) rows (no 16x padding for B=8),
       - otherwise aim for >= 2 grid steps (both v7x TensorCores get work) and cap
         tiles at 1024 rows (feature dims here are tiny, so VMEM is never the limit)."""
    b8 = _round_up(max(B, 1), 8)
    if b8 <= 8:
        return 8
    half = _round_up(pl.cdiv(b8, 2), 8)
    return max(8, min(max_tile, half))


def _vmem_limit_bytes(weights, tile_b, act_cols, out_cols, d6, weight_bufs):
    wbytes = sum(int(w.size) * w.dtype.itemsize for w in weights) * weight_bufs
    abytes = 2 * tile_b * act_cols * 4            # double-buffered merged input tile
    obytes = 2 * tile_b * out_cols * 4            # double-buffered output tile
    ibytes = 6 * tile_b * max(d6, 128) * 4        # intermediates / spill headroom
    total = wbytes + abytes + obytes + ibytes + (4 << 20)
    return int(min(max(total, 16 << 20), 64 << 20))   # respect v7x's 64 MiB physical VMEM


def encoder_mlp_forward(x, pt, weights, out_dim, *, tile_b=None,
                        single_buffer_weights=True, use_bf16=False):
    """x: (B, in_dim), pt: (B, pt_dim), weights: output of prepare_weights()."""
    B, in_dim = x.shape
    pt_dim = pt.shape[1]
    d6 = 2 * out_dim
    act_cols = in_dim + pt_dim

    if tile_b is None:
        tile_b = _pick_tile_b(B)
    tile_b = _round_up(tile_b, 8)

    nb = pl.cdiv(B, tile_b)
    b_pad = nb * tile_b

    # Merge pt into x (one input block per grid step -> half the DMA descriptors) and
    # pad batch to a whole number of tiles (zero rows are harmless and sliced off).
    xp = jnp.concatenate([x, pt], axis=-1)
    if b_pad != B:
        xp = jnp.pad(xp, ((0, b_pad - B), (0, 0)))

    # Activations tiled along batch; weights use constant index_maps so they stay
    # VMEM-resident across all grid steps, and (optionally) single-buffered.
    act_spec = pl.BlockSpec((tile_b, act_cols), lambda i: (i, 0))
    if single_buffer_weights:
        w_specs = [pl.BlockSpec(w.shape, lambda i: (0, 0), pipeline_mode=pl.Buffered(1))
                   for w in weights]
        weight_bufs = 1
    else:
        w_specs = [pl.BlockSpec(w.shape, lambda i: (0, 0)) for w in weights]
        weight_bufs = 2

    flops = 2 * b_pad * (pt_dim * in_dim + in_dim * in_dim
                         + 2 * in_dim * d6 + d6 * d6 + d6 * out_dim)
    bytes_accessed = 4 * (xp.size + sum(int(w.size) for w in weights) + b_pad * out_dim)

    kernel = functools.partial(encoder_mlp_kernel, in_dim, use_bf16)

    out = pl.pallas_call(
        kernel,
        out_shape=jax.ShapeDtypeStruct((b_pad, out_dim), jnp.float32),
        grid_spec=pltpu.PrefetchScalarGridSpec(
            num_scalar_prefetch=0,
            grid=(nb,),
            in_specs=[act_spec] + w_specs,
            out_specs=pl.BlockSpec((tile_b, out_dim), lambda i: (i, 0)),
        ),
        compiler_params=pltpu.CompilerParams(
            dimension_semantics=("parallel",),      # shard batch tiles across TCs (v7x)
            vmem_limit_bytes=_vmem_limit_bytes(weights, tile_b, act_cols,
                                               out_dim, d6, weight_bufs),
        ),
        cost_estimate=pl.CostEstimate(
            flops=int(flops),
            transcendentals=int(4 * b_pad),         # one rsqrt per LN per row
            bytes_accessed=int(bytes_accessed),
        ),
    )(xp, *weights)

    return out[:B] if b_pad != B else out


def encoder_mlp_reference(x, pt, params):
    def ln(v, g, b):
        m = jnp.mean(v, axis=-1, keepdims=True)
        var = jnp.mean(jnp.square(v - m), axis=-1, keepdims=True)
        return (v - m) * jax.lax.rsqrt(var + EPS) * g + b

    y = pt @ params["ep_w1"] + params["ep_b1"]
    y = jnp.maximum(ln(y, params["ep_g1"], params["ep_be1"]), 0.0)
    y = y @ params["ep_w2"] + params["ep_b2"]
    y = jnp.maximum(ln(y, params["ep_g2"], params["ep_be2"]), 0.0)
    h = jnp.concatenate([x, y], axis=-1)
    h = h @ params["fc_w1"] + params["fc_b1"]
    h = jnp.maximum(ln(h, params["fc_g1"], params["fc_be1"]), 0.0)
    h = h @ params["fc_w2"] + params["fc_b2"]
    h = jnp.maximum(ln(h, params["fc_g2"], params["fc_be2"]), 0.0)
    return h @ params["fc_w3"] + params["fc_b3"]


if __name__ == "__main__":
    # Small shapes consistent with the module: x: (B, in_dim), pt: (B, pt_dim)
    B, in_dim, out_dim, pt_dim = 8, 32, 16, 3

    key = jax.random.PRNGKey(0)
    kx, kpt, kp = jax.random.split(key, 3)
    x = jax.random.normal(kx, (B, in_dim), jnp.float32)
    pt = jax.random.normal(kpt, (B, pt_dim), jnp.float32)
    params = init_params(kp, in_dim, out_dim, pt_dim)

    weights = prepare_weights(params, in_dim)   # one-time prep, reused every forward

    def run(single_buffer):
        return jax.block_until_ready(
            encoder_mlp_forward(x, pt, weights, out_dim,
                                single_buffer_weights=single_buffer))

    try:
        out = run(True)
    except Exception:
        # Fallback if this jax/Mosaic version rejects single-buffered (Buffered(1)) inputs.
        out = run(False)

    ref = encoder_mlp_reference(x, pt, params)
    assert out.shape == (B, out_dim)
    assert jnp.allclose(out, ref, atol=1e-4, rtol=1e-4), "mismatch vs JAX reference"

    # NOTE: on v6e/v7x, use_bf16=True feeds bf16 operands to the MXU (2-4x matmul
    # throughput, half the weight DMA) at the cost of the strict 1e-4 tolerance.

    print("KERNEL_OK")
</pallas_src>

<mosaic_0001>
module attributes {stable_mosaic.version = 11 : i64} {
  func.func @encoder_mlp_kernel(%arg0: i32, %arg1: memref<8x35xf32, #tpu.memory_space<vmem>>, %arg2: memref<3x32xf32, #tpu.memory_space<vmem>>, %arg3: memref<1x32xf32, #tpu.memory_space<vmem>>, %arg4: memref<1x32xf32, #tpu.memory_space<vmem>>, %arg5: memref<1x32xf32, #tpu.memory_space<vmem>>, %arg6: memref<32x32xf32, #tpu.memory_space<vmem>>, %arg7: memref<1x32xf32, #tpu.memory_space<vmem>>, %arg8: memref<1x32xf32, #tpu.memory_space<vmem>>, %arg9: memref<1x32xf32, #tpu.memory_space<vmem>>, %arg10: memref<32x32xf32, #tpu.memory_space<vmem>>, %arg11: memref<32x32xf32, #tpu.memory_space<vmem>>, %arg12: memref<1x32xf32, #tpu.memory_space<vmem>>, %arg13: memref<1x32xf32, #tpu.memory_space<vmem>>, %arg14: memref<1x32xf32, #tpu.memory_space<vmem>>, %arg15: memref<32x32xf32, #tpu.memory_space<vmem>>, %arg16: memref<1x32xf32, #tpu.memory_space<vmem>>, %arg17: memref<1x32xf32, #tpu.memory_space<vmem>>, %arg18: memref<1x32xf32, #tpu.memory_space<vmem>>, %arg19: memref<32x16xf32, #tpu.memory_space<vmem>>, %arg20: memref<1x16xf32, #tpu.memory_space<vmem>>, %arg21: memref<8x16xf32, #tpu.memory_space<vmem>>) attributes {dimension_semantics = [#tpu.dimension_semantics<parallel>], iteration_bounds = array<i64: 1>, scalar_prefetch = 0 : i64, scratch_operands = 0 : i64, tpu.core_type = #tpu.core_type<tc>, window_params = [{transform_indices = @transform_0, window_bounds = array<i64: 8, 35>}, {pipeline_mode = #tpu.pipeline_mode<synchronous>, transform_indices = @transform_1, window_bounds = array<i64: 3, 32>}, {pipeline_mode = #tpu.pipeline_mode<synchronous>, transform_indices = @transform_2, window_bounds = array<i64: 1, 32>}, {pipeline_mode = #tpu.pipeline_mode<synchronous>, transform_indices = @transform_3, window_bounds = array<i64: 1, 32>}, {pipeline_mode = #tpu.pipeline_mode<synchronous>, transform_indices = @transform_4, window_bounds = array<i64: 1, 32>}, {pipeline_mode = #tpu.pipeline_mode<synchronous>, transform_indices = @transform_5, window_bounds = array<i64: 32, 32>}, {pipeline_mode = #tpu.pipeline_mode<synchronous>, transform_indices = @transform_6, window_bounds = array<i64: 1, 32>}, {pipeline_mode = #tpu.pipeline_mode<synchronous>, transform_indices = @transform_7, window_bounds = array<i64: 1, 32>}, {pipeline_mode = #tpu.pipeline_mode<synchronous>, transform_indices = @transform_8, window_bounds = array<i64: 1, 32>}, {pipeline_mode = #tpu.pipeline_mode<synchronous>, transform_indices = @transform_9, window_bounds = array<i64: 32, 32>}, {pipeline_mode = #tpu.pipeline_mode<synchronous>, transform_indices = @transform_10, window_bounds = array<i64: 32, 32>}, {pipeline_mode = #tpu.pipeline_mode<synchronous>, transform_indices = @transform_11, window_bounds = array<i64: 1, 32>}, {pipeline_mode = #tpu.pipeline_mode<synchronous>, transform_indices = @transform_12, window_bounds = array<i64: 1, 32>}, {pipeline_mode = #tpu.pipeline_mode<synchronous>, transform_indices = @transform_13, window_bounds = array<i64: 1, 32>}, {pipeline_mode = #tpu.pipeline_mode<synchronous>, transform_indices = @transform_14, window_bounds = array<i64: 32, 32>}, {pipeline_mode = #tpu.pipeline_mode<synchronous>, transform_indices = @transform_15, window_bounds = array<i64: 1, 32>}, {pipeline_mode = #tpu.pipeline_mode<synchronous>, transform_indices = @transform_16, window_bounds = array<i64: 1, 32>}, {pipeline_mode = #tpu.pipeline_mode<synchronous>, transform_indices = @transform_17, window_bounds = array<i64: 1, 32>}, {pipeline_mode = #tpu.pipeline_mode<synchronous>, transform_indices = @transform_18, window_bounds = array<i64: 32, 16>}, {pipeline_mode = #tpu.pipeline_mode<synchronous>, transform_indices = @transform_19, window_bounds = array<i64: 1, 16>}, {transform_indices = @transform_20, window_bounds = array<i64: 8, 16>}]} {
    %c0 = arith.constant 0 : index
    %c0_0 = arith.constant 0 : index
    %0 = vector.load %arg1[%c0, %c0_0] : memref<8x35xf32, #tpu.memory_space<vmem>>, vector<8x35xf32>
    %1 = vector.extract_strided_slice %0 {offsets = [0, 0], sizes = [8, 32], strides = [1, 1]} : vector<8x35xf32> to vector<8x32xf32>
    %2 = vector.extract_strided_slice %0 {offsets = [0, 32], sizes = [8, 3], strides = [1, 1]} : vector<8x35xf32> to vector<8x3xf32>
    %c0_1 = arith.constant 0 : index
    %c0_2 = arith.constant 0 : index
    %3 = vector.load %arg2[%c0_1, %c0_2] : memref<3x32xf32, #tpu.memory_space<vmem>>, vector<3x32xf32>
    %4 = vector.extract_strided_slice %2 {offsets = [0, 0], sizes = [8, 1], strides = [1, 1]} : vector<8x3xf32> to vector<8x1xf32>
    %5 = vector.extract_strided_slice %3 {offsets = [0, 0], sizes = [1, 32], strides = [1, 1]} : vector<3x32xf32> to vector<1x32xf32>
    %6 = vector.broadcast %4 : vector<8x1xf32> to vector<8x32xf32>
    %7 = vector.broadcast %5 : vector<1x32xf32> to vector<8x32xf32>
    %8 = arith.mulf %6, %7 : vector<8x32xf32>
    %9 = vector.extract_strided_slice %2 {offsets = [0, 1], sizes = [8, 1], strides = [1, 1]} : vector<8x3xf32> to vector<8x1xf32>
    %10 = vector.extract_strided_slice %3 {offsets = [1, 0], sizes = [1, 32], strides = [1, 1]} : vector<3x32xf32> to vector<1x32xf32>
    %11 = vector.broadcast %9 : vector<8x1xf32> to vector<8x32xf32>
    %12 = vector.broadcast %10 : vector<1x32xf32> to vector<8x32xf32>
    %13 = arith.mulf %11, %12 : vector<8x32xf32>
    %14 = arith.addf %8, %13 : vector<8x32xf32>
    %15 = vector.extract_strided_slice %2 {offsets = [0, 2], sizes = [8, 1], strides = [1, 1]} : vector<8x3xf32> to vector<8x1xf32>
    %16 = vector.extract_strided_slice %3 {offsets = [2, 0], sizes = [1, 32], strides = [1, 1]} : vector<3x32xf32> to vector<1x32xf32>
    %17 = vector.broadcast %15 : vector<8x1xf32> to vector<8x32xf32>
    %18 = vector.broadcast %16 : vector<1x32xf32> to vector<8x32xf32>
    %19 = arith.mulf %17, %18 : vector<8x32xf32>
    %20 = arith.addf %14, %19 : vector<8x32xf32>
    %c0_3 = arith.constant 0 : index
    %c0_4 = arith.constant 0 : index
    %21 = vector.load %arg3[%c0_3, %c0_4] : memref<1x32xf32, #tpu.memory_space<vmem>>, vector<1x32xf32>
    %22 = vector.broadcast %21 : vector<1x32xf32> to vector<8x32xf32>
    %23 = arith.addf %20, %22 : vector<8x32xf32>
    %c0_5 = arith.constant 0 : index
    %c0_6 = arith.constant 0 : index
    %24 = vector.load %arg4[%c0_5, %c0_6] : memref<1x32xf32, #tpu.memory_space<vmem>>, vector<1x32xf32>
    %c0_7 = arith.constant 0 : index
    %c0_8 = arith.constant 0 : index
    %25 = vector.load %arg5[%c0_7, %c0_8] : memref<1x32xf32, #tpu.memory_space<vmem>>, vector<1x32xf32>
    %cst = arith.constant dense<0.000000e+00> : vector<8xf32>
    %26 = vector.multi_reduction <add>, %23, %cst [1] : vector<8x32xf32> to vector<8xf32>
    %27 = vector.shape_cast %26 : vector<8xf32> to vector<8x1xf32>
    %28 = arith.mulf %23, %23 : vector<8x32xf32>
    %cst_9 = arith.constant dense<0.000000e+00> : vector<8xf32>
    %29 = vector.multi_reduction <add>, %28, %cst_9 [1] : vector<8x32xf32> to vector<8xf32>
    %30 = vector.shape_cast %29 : vector<8xf32> to vector<8x1xf32>
    %cst_10 = arith.constant 3.125000e-02 : f32
    %31 = vector.broadcast %cst_10 : f32 to vector<8x1xf32>
    %32 = arith.mulf %27, %31 : vector<8x1xf32>
    %cst_11 = arith.constant 3.125000e-02 : f32
    %33 = vector.broadcast %cst_11 : f32 to vector<8x1xf32>
    %34 = arith.mulf %30, %33 : vector<8x1xf32>
    %35 = arith.mulf %32, %32 : vector<8x1xf32>
    %36 = arith.subf %34, %35 : vector<8x1xf32>
    %cst_12 = arith.constant 0.000000e+00 : f32
    %37 = vector.broadcast %cst_12 : f32 to vector<8x1xf32>
    %38 = arith.maximumf %36, %37 : vector<8x1xf32>
    %cst_13 = arith.constant 9.99999974E-6 : f32
    %39 = vector.broadcast %cst_13 : f32 to vector<8x1xf32>
    %40 = arith.addf %38, %39 : vector<8x1xf32>
    %41 = math.rsqrt %40 : vector<8x1xf32>
    %42 = vector.broadcast %32 : vector<8x1xf32> to vector<8x32xf32>
    %43 = arith.subf %23, %42 : vector<8x32xf32>
    %44 = vector.broadcast %41 : vector<8x1xf32> to vector<8x32xf32>
    %45 = vector.broadcast %24 : vector<1x32xf32> to vector<8x32xf32>
    %46 = arith.mulf %44, %45 : vector<8x32xf32>
    %47 = arith.mulf %43, %46 : vector<8x32xf32>
    %48 = vector.broadcast %25 : vector<1x32xf32> to vector<8x32xf32>
    %49 = arith.addf %47, %48 : vector<8x32xf32>
    %cst_14 = arith.constant 0.000000e+00 : f32
    %50 = vector.broadcast %cst_14 : f32 to vector<8x32xf32>
    %51 = arith.maximumf %49, %50 : vector<8x32xf32>
    %c0_15 = arith.constant 0 : index
    %c0_16 = arith.constant 0 : index
    %52 = vector.load %arg6[%c0_15, %c0_16] : memref<32x32xf32, #tpu.memory_space<vmem>>, vector<32x32xf32>
    %cst_17 = arith.constant dense<0.000000e+00> : vector<8x32xf32>
    %53 = tpu.matmul %51, %52, %cst_17 {dimension_numbers = #tpu.dot_dimension_numbers<[1], [0], [0], [1], [0, 0, 1, 1], [], []>} : vector<8x32xf32>, vector<32x32xf32>, vector<8x32xf32> -> vector<8x32xf32>
    %c0_18 = arith.constant 0 : index
    %c0_19 = arith.constant 0 : index
    %54 = vector.load %arg7[%c0_18, %c0_19] : memref<1x32xf32, #tpu.memory_space<vmem>>, vector<1x32xf32>
    %55 = vector.broadcast %54 : vector<1x32xf32> to vector<8x32xf32>
    %56 = arith.addf %53, %55 : vector<8x32xf32>
    %c0_20 = arith.constant 0 : index
    %c0_21 = arith.constant 0 : index
    %57 = vector.load %arg8[%c0_20, %c0_21] : memref<1x32xf32, #tpu.memory_space<vmem>>, vector<1x32xf32>
    %c0_22 = arith.constant 0 : index
    %c0_23 = arith.constant 0 : index
    %58 = vector.load %arg9[%c0_22, %c0_23] : memref<1x32xf32, #tpu.memory_space<vmem>>, vector<1x32xf32>
    %cst_24 = arith.constant dense<0.000000e+00> : vector<8xf32>
    %59 = vector.multi_reduction <add>, %56, %cst_24 [1] : vector<8x32xf32> to vector<8xf32>
    %60 = vector.shape_cast %59 : vector<8xf32> to vector<8x1xf32>
    %61 = arith.mulf %56, %56 : vector<8x32xf32>
    %cst_25 = arith.constant dense<0.000000e+00> : vector<8xf32>
    %62 = vector.multi_reduction <add>, %61, %cst_25 [1] : vector<8x32xf32> to vector<8xf32>
    %63 = vector.shape_cast %62 : vector<8xf32> to vector<8x1xf32>
    %cst_26 = arith.constant 3.125000e-02 : f32
    %64 = vector.broadcast %cst_26 : f32 to vector<8x1xf32>
    %65 = arith.mulf %60, %64 : vector<8x1xf32>
    %cst_27 = arith.constant 3.125000e-02 : f32
    %66 = vector.broadcast %cst_27 : f32 to vector<8x1xf32>
    %67 = arith.mulf %63, %66 : vector<8x1xf32>
    %68 = arith.mulf %65, %65 : vector<8x1xf32>
    %69 = arith.subf %67, %68 : vector<8x1xf32>
    %cst_28 = arith.constant 0.000000e+00 : f32
    %70 = vector.broadcast %cst_28 : f32 to vector<8x1xf32>
    %71 = arith.maximumf %69, %70 : vector<8x1xf32>
    %cst_29 = arith.constant 9.99999974E-6 : f32
    %72 = vector.broadcast %cst_29 : f32 to vector<8x1xf32>
    %73 = arith.addf %71, %72 : vector<8x1xf32>
    %74 = math.rsqrt %73 : vector<8x1xf32>
    %75 = vector.broadcast %65 : vector<8x1xf32> to vector<8x32xf32>
    %76 = arith.subf %56, %75 : vector<8x32xf32>
    %77 = vector.broadcast %74 : vector<8x1xf32> to vector<8x32xf32>
    %78 = vector.broadcast %57 : vector<1x32xf32> to vector<8x32xf32>
    %79 = arith.mulf %77, %78 : vector<8x32xf32>
    %80 = arith.mulf %76, %79 : vector<8x32xf32>
    %81 = vector.broadcast %58 : vector<1x32xf32> to vector<8x32xf32>
    %82 = arith.addf %80, %81 : vector<8x32xf32>
    %cst_30 = arith.constant 0.000000e+00 : f32
    %83 = vector.broadcast %cst_30 : f32 to vector<8x32xf32>
    %84 = arith.maximumf %82, %83 : vector<8x32xf32>
    %c0_31 = arith.constant 0 : index
    %c0_32 = arith.constant 0 : index
    %85 = vector.load %arg10[%c0_31, %c0_32] : memref<32x32xf32, #tpu.memory_space<vmem>>, vector<32x32xf32>
    %cst_33 = arith.constant dense<0.000000e+00> : vector<8x32xf32>
    %86 = tpu.matmul %1, %85, %cst_33 {dimension_numbers = #tpu.dot_dimension_numbers<[1], [0], [0], [1], [0, 0, 1, 1], [], []>} : vector<8x32xf32>, vector<32x32xf32>, vector<8x32xf32> -> vector<8x32xf32>
    %c0_34 = arith.constant 0 : index
    %c0_35 = arith.constant 0 : index
    %87 = vector.load %arg11[%c0_34, %c0_35] : memref<32x32xf32, #tpu.memory_space<vmem>>, vector<32x32xf32>
    %cst_36 = arith.constant dense<0.000000e+00> : vector<8x32xf32>
    %88 = tpu.matmul %84, %87, %cst_36 {dimension_numbers = #tpu.dot_dimension_numbers<[1], [0], [0], [1], [0, 0, 1, 1], [], []>} : vector<8x32xf32>, vector<32x32xf32>, vector<8x32xf32> -> vector<8x32xf32>
    %89 = arith.addf %86, %88 : vector<8x32xf32>
    %c0_37 = arith.constant 0 : index
    %c0_38 = arith.constant 0 : index
    %90 = vector.load %arg12[%c0_37, %c0_38] : memref<1x32xf32, #tpu.memory_space<vmem>>, vector<1x32xf32>
    %91 = vector.broadcast %90 : vector<1x32xf32> to vector<8x32xf32>
    %92 = arith.addf %89, %91 : vector<8x32xf32>
    %c0_39 = arith.constant 0 : index
    %c0_40 = arith.constant 0 : index
    %93 = vector.load %arg13[%c0_39, %c0_40] : memref<1x32xf32, #tpu.memory_space<vmem>>, vector<1x32xf32>
    %c0_41 = arith.constant 0 : index
    %c0_42 = arith.constant 0 : index
    %94 = vector.load %arg14[%c0_41, %c0_42] : memref<1x32xf32, #tpu.memory_space<vmem>>, vector<1x32xf32>
    %cst_43 = arith.constant dense<0.000000e+00> : vector<8xf32>
    %95 = vector.multi_reduction <add>, %92, %cst_43 [1] : vector<8x32xf32> to vector<8xf32>
    %96 = vector.shape_cast %95 : vector<8xf32> to vector<8x1xf32>
    %97 = arith.mulf %92, %92 : vector<8x32xf32>
    %cst_44 = arith.constant dense<0.000000e+00> : vector<8xf32>
    %98 = vector.multi_reduction <add>, %97, %cst_44 [1] : vector<8x32xf32> to vector<8xf32>
    %99 = vector.shape_cast %98 : vector<8xf32> to vector<8x1xf32>
    %cst_45 = arith.constant 3.125000e-02 : f32
    %100 = vector.broadcast %cst_45 : f32 to vector<8x1xf32>
    %101 = arith.mulf %96, %100 : vector<8x1xf32>
    %cst_46 = arith.constant 3.125000e-02 : f32
    %102 = vector.broadcast %cst_46 : f32 to vector<8x1xf32>
    %103 = arith.mulf %99, %102 : vector<8x1xf32>
    %104 = arith.mulf %101, %101 : vector<8x1xf32>
    %105 = arith.subf %103, %104 : vector<8x1xf32>
    %cst_47 = arith.constant 0.000000e+00 : f32
    %106 = vector.broadcast %cst_47 : f32 to vector<8x1xf32>
    %107 = arith.maximumf %105, %106 : vector<8x1xf32>
    %cst_48 = arith.constant 9.99999974E-6 : f32
    %108 = vector.broadcast %cst_48 : f32 to vector<8x1xf32>
    %109 = arith.addf %107, %108 : vector<8x1xf32>
    %110 = math.rsqrt %109 : vector<8x1xf32>
    %111 = vector.broadcast %101 : vector<8x1xf32> to vector<8x32xf32>
    %112 = arith.subf %92, %111 : vector<8x32xf32>
    %113 = vector.broadcast %110 : vector<8x1xf32> to vector<8x32xf32>
    %114 = vector.broadcast %93 : vector<1x32xf32> to vector<8x32xf32>
    %115 = arith.mulf %113, %114 : vector<8x32xf32>
    %116 = arith.mulf %112, %115 : vector<8x32xf32>
    %117 = vector.broadcast %94 : vector<1x32xf32> to vector<8x32xf32>
    %118 = arith.addf %116, %117 : vector<8x32xf32>
    %cst_49 = arith.constant 0.000000e+00 : f32
    %119 = vector.broadcast %cst_49 : f32 to vector<8x32xf32>
    %120 = arith.maximumf %118, %119 : vector<8x32xf32>
    %c0_50 = arith.constant 0 : index
    %c0_51 = arith.constant 0 : index
    %121 = vector.load %arg15[%c0_50, %c0_51] : memref<32x32xf32, #tpu.memory_space<vmem>>, vector<32x32xf32>
    %cst_52 = arith.constant dense<0.000000e+00> : vector<8x32xf32>
    %122 = tpu.matmul %120, %121, %cst_52 {dimension_numbers = #tpu.dot_dimension_numbers<[1], [0], [0], [1], [0, 0, 1, 1], [], []>} : vector<8x32xf32>, vector<32x32xf32>, vector<8x32xf32> -> vector<8x32xf32>
    %c0_53 = arith.constant 0 : index
    %c0_54 = arith.constant 0 : index
    %123 = vector.load %arg16[%c0_53, %c0_54] : memref<1x32xf32, #tpu.memory_space<vmem>>, vector<1x32xf32>
    %124 = vector.broadcast %123 : vector<1x32xf32> to vector<8x32xf32>
    %125 = arith.addf %122, %124 : vector<8x32xf32>
    %c0_55 = arith.constant 0 : index
    %c0_56 = arith.constant 0 : index
    %126 = vector.load %arg17[%c0_55, %c0_56] : memref<1x32xf32, #tpu.memory_space<vmem>>, vector<1x32xf32>
    %c0_57 = arith.constant 0 : index
    %c0_58 = arith.constant 0 : index
    %127 = vector.load %arg18[%c0_57, %c0_58] : memref<1x32xf32, #tpu.memory_space<vmem>>, vector<1x32xf32>
    %cst_59 = arith.constant dense<0.000000e+00> : vector<8xf32>
    %128 = vector.multi_reduction <add>, %125, %cst_59 [1] : vector<8x32xf32> to vector<8xf32>
    %129 = vector.shape_cast %128 : vector<8xf32> to vector<8x1xf32>
    %130 = arith.mulf %125, %125 : vector<8x32xf32>
    %cst_60 = arith.constant dense<0.000000e+00> : vector<8xf32>
    %131 = vector.multi_reduction <add>, %130, %cst_60 [1] : vector<8x32xf32> to vector<8xf32>
    %132 = vector.shape_cast %131 : vector<8xf32> to vector<8x1xf32>
    %cst_61 = arith.constant 3.125000e-02 : f32
    %133 = vector.broadcast %cst_61 : f32 to vector<8x1xf32>
    %134 = arith.mulf %129, %133 : vector<8x1xf32>
    %cst_62 = arith.constant 3.125000e-02 : f32
    %135 = vector.broadcast %cst_62 : f32 to vector<8x1xf32>
    %136 = arith.mulf %132, %135 : vector<8x1xf32>
    %137 = arith.mulf %134, %134 : vector<8x1xf32>
    %138 = arith.subf %136, %137 : vector<8x1xf32>
    %cst_63 = arith.constant 0.000000e+00 : f32
    %139 = vector.broadcast %cst_63 : f32 to vector<8x1xf32>
    %140 = arith.maximumf %138, %139 : vector<8x1xf32>
    %cst_64 = arith.constant 9.99999974E-6 : f32
    %141 = vector.broadcast %cst_64 : f32 to vector<8x1xf32>
    %142 = arith.addf %140, %141 : vector<8x1xf32>
    %143 = math.rsqrt %142 : vector<8x1xf32>
    %144 = vector.broadcast %134 : vector<8x1xf32> to vector<8x32xf32>
    %145 = arith.subf %125, %144 : vector<8x32xf32>
    %146 = vector.broadcast %143 : vector<8x1xf32> to vector<8x32xf32>
    %147 = vector.broadcast %126 : vector<1x32xf32> to vector<8x32xf32>
    %148 = arith.mulf %146, %147 : vector<8x32xf32>
    %149 = arith.mulf %145, %148 : vector<8x32xf32>
    %150 = vector.broadcast %127 : vector<1x32xf32> to vector<8x32xf32>
    %151 = arith.addf %149, %150 : vector<8x32xf32>
    %cst_65 = arith.constant 0.000000e+00 : f32
    %152 = vector.broadcast %cst_65 : f32 to vector<8x32xf32>
    %153 = arith.maximumf %151, %152 : vector<8x32xf32>
    %c0_66 = arith.constant 0 : index
    %c0_67 = arith.constant 0 : index
    %154 = vector.load %arg19[%c0_66, %c0_67] : memref<32x16xf32, #tpu.memory_space<vmem>>, vector<32x16xf32>
    %cst_68 = arith.constant dense<0.000000e+00> : vector<8x16xf32>
    %155 = tpu.matmul %153, %154, %cst_68 {dimension_numbers = #tpu.dot_dimension_numbers<[1], [0], [0], [1], [0, 0, 1, 1], [], []>} : vector<8x32xf32>, vector<32x16xf32>, vector<8x16xf32> -> vector<8x16xf32>
    %c0_69 = arith.constant 0 : index
    %c0_70 = arith.constant 0 : index
    %156 = vector.load %arg20[%c0_69, %c0_70] : memref<1x16xf32, #tpu.memory_space<vmem>>, vector<1x16xf32>
    %157 = vector.broadcast %156 : vector<1x16xf32> to vector<8x16xf32>
    %158 = arith.addf %155, %157 : vector<8x16xf32>
    %c0_71 = arith.constant 0 : index
    %c0_72 = arith.constant 0 : index
    %159 = vector.load %arg21[%c0_71, %c0_72] : memref<8x16xf32, #tpu.memory_space<vmem>>, vector<8x16xf32>
    tpu.vector_store %arg21[%c0_71, %c0_72], %158 {strides = array<i32>} : memref<8x16xf32, #tpu.memory_space<vmem>>, vector<8x16xf32>,
    return
  }
  func.func @transform_0(%arg0: i32) -> (i32, i32) {
    %c0_i32 = arith.constant 0 : i32
    %c0_i32_0 = arith.constant 0 : i32
    return %arg0, %c0_i32 : i32, i32
  }
  func.func @transform_1(%arg0: i32) -> (i32, i32) {
    %c0_i32 = arith.constant 0 : i32
    %c0_i32_0 = arith.constant 0 : i32
    %c0_i32_1 = arith.constant 0 : i32
    return %c0_i32, %c0_i32_0 : i32, i32
  }
  func.func @transform_2(%arg0: i32) -> (i32, i32) {
    %c0_i32 = arith.constant 0 : i32
    %c0_i32_0 = arith.constant 0 : i32
    %c0_i32_1 = arith.constant 0 : i32
    return %c0_i32, %c0_i32_0 : i32, i32
  }
  func.func @transform_3(%arg0: i32) -> (i32, i32) {
    %c0_i32 = arith.constant 0 : i32
    %c0_i32_0 = arith.constant 0 : i32
    %c0_i32_1 = arith.constant 0 : i32
    return %c0_i32, %c0_i32_0 : i32, i32
  }
  func.func @transform_4(%arg0: i32) -> (i32, i32) {
    %c0_i32 = arith.constant 0 : i32
    %c0_i32_0 = arith.constant 0 : i32
    %c0_i32_1 = arith.constant 0 : i32
    return %c0_i32, %c0_i32_0 : i32, i32
  }
  func.func @transform_5(%arg0: i32) -> (i32, i32) {
    %c0_i32 = arith.constant 0 : i32
    %c0_i32_0 = arith.constant 0 : i32
    %c0_i32_1 = arith.constant 0 : i32
    return %c0_i32, %c0_i32_0 : i32, i32
  }
  func.func @transform_6(%arg0: i32) -> (i32, i32) {
    %c0_i32 = arith.constant 0 : i32
    %c0_i32_0 = arith.constant 0 : i32
    %c0_i32_1 = arith.constant 0 : i32
    return %c0_i32, %c0_i32_0 : i32, i32
  }
  func.func @transform_7(%arg0: i32) -> (i32, i32) {
    %c0_i32 = arith.constant 0 : i32
    %c0_i32_0 = arith.constant 0 : i32
    %c0_i32_1 = arith.constant 0 : i32
    return %c0_i32, %c0_i32_0 : i32, i32
  }
  func.func @transform_8(%arg0: i32) -> (i32, i32) {
    %c0_i32 = arith.constant 0 : i32
    %c0_i32_0 = arith.constant 0 : i32
    %c0_i32_1 = arith.constant 0 : i32
    return %c0_i32, %c0_i32_0 : i32, i32
  }
  func.func @transform_9(%arg0: i32) -> (i32, i32) {
    %c0_i32 = arith.constant 0 : i32
    %c0_i32_0 = arith.constant 0 : i32
    %c0_i32_1 = arith.constant 0 : i32
    return %c0_i32, %c0_i32_0 : i32, i32
  }
  func.func @transform_10(%arg0: i32) -> (i32, i32) {
    %c0_i32 = arith.constant 0 : i32
    %c0_i32_0 = arith.constant 0 : i32
    %c0_i32_1 = arith.constant 0 : i32
    return %c0_i32, %c0_i32_0 : i32, i32
  }
  func.func @transform_11(%arg0: i32) -> (i32, i32) {
    %c0_i32 = arith.constant 0 : i32
    %c0_i32_0 = arith.constant 0 : i32
    %c0_i32_1 = arith.constant 0 : i32
    return %c0_i32, %c0_i32_0 : i32, i32
  }
  func.func @transform_12(%arg0: i32) -> (i32, i32) {
    %c0_i32 = arith.constant 0 : i32
    %c0_i32_0 = arith.constant 0 : i32
    %c0_i32_1 = arith.constant 0 : i32
    return %c0_i32, %c0_i32_0 : i32, i32
  }
  func.func @transform_13(%arg0: i32) -> (i32, i32) {
    %c0_i32 = arith.constant 0 : i32
    %c0_i32_0 = arith.constant 0 : i32
    %c0_i32_1 = arith.constant 0 : i32
    return %c0_i32, %c0_i32_0 : i32, i32
  }
  func.func @transform_14(%arg0: i32) -> (i32, i32) {
    %c0_i32 = arith.constant 0 : i32
    %c0_i32_0 = arith.constant 0 : i32
    %c0_i32_1 = arith.constant 0 : i32
    return %c0_i32, %c0_i32_0 : i32, i32
  }
  func.func @transform_15(%arg0: i32) -> (i32, i32) {
    %c0_i32 = arith.constant 0 : i32
    %c0_i32_0 = arith.constant 0 : i32
    %c0_i32_1 = arith.constant 0 : i32
    return %c0_i32, %c0_i32_0 : i32, i32
  }
  func.func @transform_16(%arg0: i32) -> (i32, i32) {
    %c0_i32 = arith.constant 0 : i32
    %c0_i32_0 = arith.constant 0 : i32
    %c0_i32_1 = arith.constant 0 : i32
    return %c0_i32, %c0_i32_0 : i32, i32
  }
  func.func @transform_17(%arg0: i32) -> (i32, i32) {
    %c0_i32 = arith.constant 0 : i32
    %c0_i32_0 = arith.constant 0 : i32
    %c0_i32_1 = arith.constant 0 : i32
    return %c0_i32, %c0_i32_0 : i32, i32
  }
  func.func @transform_18(%arg0: i32) -> (i32, i32) {
    %c0_i32 = arith.constant 0 : i32
    %c0_i32_0 = arith.constant 0 : i32
    %c0_i32_1 = arith.constant 0 : i32
    return %c0_i32, %c0_i32_0 : i32, i32
  }
  func.func @transform_19(%arg0: i32) -> (i32, i32) {
    %c0_i32 = arith.constant 0 : i32
    %c0_i32_0 = arith.constant 0 : i32
    %c0_i32_1 = arith.constant 0 : i32
    return %c0_i32, %c0_i32_0 : i32, i32
  }
  func.func @transform_20(%arg0: i32) -> (i32, i32) {
    %c0_i32 = arith.constant 0 : i32
    %c0_i32_0 = arith.constant 0 : i32
    return %arg0, %c0_i32 : i32, i32
  }
}

module attributes {stable_mosaic.version = 11 : i64} {
  func.func @encoder_mlp_kernel(%arg0: i32, %arg1: memref<8x35xf32, #tpu.memory_space<vmem>>, %arg2: memref<3x32xf32, #tpu.memory_space<vmem>>, %arg3: memref<1x32xf32, #tpu.memory_space<vmem>>, %arg4: memref<1x32xf32, #tpu.memory_space<vmem>>, %arg5: memref<1x32xf32, #tpu.memory_space<vmem>>, %arg6: memref<32x32xf32, #tpu.memory_space<vmem>>, %arg7: memref<1x32xf32, #tpu.memory_space<vmem>>, %arg8: memref<1x32xf32, #tpu.memory_space<vmem>>, %arg9: memref<1x32xf32, #tpu.memory_space<vmem>>, %arg10: memref<32x32xf32, #tpu.memory_space<vmem>>, %arg11: memref<32x32xf32, #tpu.memory_space<vmem>>, %arg12: memref<1x32xf32, #tpu.memory_space<vmem>>, %arg13: memref<1x32xf32, #tpu.memory_space<vmem>>, %arg14: memref<1x32xf32, #tpu.memory_space<vmem>>, %arg15: memref<32x32xf32, #tpu.memory_space<vmem>>, %arg16: memref<1x32xf32, #tpu.memory_space<vmem>>, %arg17: memref<1x32xf32, #tpu.memory_space<vmem>>, %arg18: memref<1x32xf32, #tpu.memory_space<vmem>>, %arg19: memref<32x16xf32, #tpu.memory_space<vmem>>, %arg20: memref<1x16xf32, #tpu.memory_space<vmem>>, %arg21: memref<8x16xf32, #tpu.memory_space<vmem>>) attributes {dimension_semantics = [#tpu.dimension_semantics<parallel>], iteration_bounds = array<i64: 1>, scalar_prefetch = 0 : i64, scratch_operands = 0 : i64, tpu.core_type = #tpu.core_type<tc>, window_params = [{transform_indices = @transform_0, window_bounds = array<i64: 8, 35>}, {pipeline_mode = #tpu.pipeline_mode<synchronous>, transform_indices = @transform_1, window_bounds = array<i64: 3, 32>}, {pipeline_mode = #tpu.pipeline_mode<synchronous>, transform_indices = @transform_2, window_bounds = array<i64: 1, 32>}, {pipeline_mode = #tpu.pipeline_mode<synchronous>, transform_indices = @transform_3, window_bounds = array<i64: 1, 32>}, {pipeline_mode = #tpu.pipeline_mode<synchronous>, transform_indices = @transform_4, window_bounds = array<i64: 1, 32>}, {pipeline_mode = #tpu.pipeline_mode<synchronous>, transform_indices = @transform_5, window_bounds = array<i64: 32, 32>}, {pipeline_mode = #tpu.pipeline_mode<synchronous>, transform_indices = @transform_6, window_bounds = array<i64: 1, 32>}, {pipeline_mode = #tpu.pipeline_mode<synchronous>, transform_indices = @transform_7, window_bounds = array<i64: 1, 32>}, {pipeline_mode = #tpu.pipeline_mode<synchronous>, transform_indices = @transform_8, window_bounds = array<i64: 1, 32>}, {pipeline_mode = #tpu.pipeline_mode<synchronous>, transform_indices = @transform_9, window_bounds = array<i64: 32, 32>}, {pipeline_mode = #tpu.pipeline_mode<synchronous>, transform_indices = @transform_10, window_bounds = array<i64: 32, 32>}, {pipeline_mode = #tpu.pipeline_mode<synchronous>, transform_indices = @transform_11, window_bounds = array<i64: 1, 32>}, {pipeline_mode = #tpu.pipeline_mode<synchronous>, transform_indices = @transform_12, window_bounds = array<i64: 1, 32>}, {pipeline_mode = #tpu.pipeline_mode<synchronous>, transform_indices = @transform_13, window_bounds = array<i64: 1, 32>}, {pipeline_mode = #tpu.pipeline_mode<synchronous>, transform_indices = @transform_14, window_bounds = array<i64: 32, 32>}, {pipeline_mode = #tpu.pipeline_mode<synchronous>, transform_indices = @transform_15, window_bounds = array<i64: 1, 32>}, {pipeline_mode = #tpu.pipeline_mode<synchronous>, transform_indices = @transform_16, window_bounds = array<i64: 1, 32>}, {pipeline_mode = #tpu.pipeline_mode<synchronous>, transform_indices = @transform_17, window_bounds = array<i64: 1, 32>}, {pipeline_mode = #tpu.pipeline_mode<synchronous>, transform_indices = @transform_18, window_bounds = array<i64: 32, 16>}, {pipeline_mode = #tpu.pipeline_mode<synchronous>, transform_indices = @transform_19, window_bounds = array<i64: 1, 16>}, {transform_indices = @transform_20, window_bounds = array<i64: 8, 16>}]} {
    %c0 = arith.constant 0 : index
    %c0_0 = arith.constant 0 : index
    %0 = vector.load %arg1[%c0, %c0_0] : memref<8x35xf32, #tpu.memory_space<vmem>>, vector<8x35xf32>
    %1 = vector.extract_strided_slice %0 {offsets = [0, 0], sizes = [8, 32], strides = [1, 1]} : vector<8x35xf32> to vector<8x32xf32>
    %2 = vector.extract_strided_slice %0 {offsets = [0, 32], sizes = [8, 3], strides = [1, 1]} : vector<8x35xf32> to vector<8x3xf32>
    %c0_1 = arith.constant 0 : index
    %c0_2 = arith.constant 0 : index
    %3 = vector.load %arg2[%c0_1, %c0_2] : memref<3x32xf32, #tpu.memory_space<vmem>>, vector<3x32xf32>
    %4 = vector.extract_strided_slice %2 {offsets = [0, 0], sizes = [8, 1], strides = [1, 1]} : vector<8x3xf32> to vector<8x1xf32>
    %5 = vector.extract_strided_slice %3 {offsets = [0, 0], sizes = [1, 32], strides = [1, 1]} : vector<3x32xf32> to vector<1x32xf32>
    %6 = vector.broadcast %4 : vector<8x1xf32> to vector<8x32xf32>
    %7 = vector.broadcast %5 : vector<1x32xf32> to vector<8x32xf32>
    %8 = arith.mulf %6, %7 : vector<8x32xf32>
    %9 = vector.extract_strided_slice %2 {offsets = [0, 1], sizes = [8, 1], strides = [1, 1]} : vector<8x3xf32> to vector<8x1xf32>
    %10 = vector.extract_strided_slice %3 {offsets = [1, 0], sizes = [1, 32], strides = [1, 1]} : vector<3x32xf32> to vector<1x32xf32>
    %11 = vector.broadcast %9 : vector<8x1xf32> to vector<8x32xf32>
    %12 = vector.broadcast %10 : vector<1x32xf32> to vector<8x32xf32>
    %13 = arith.mulf %11, %12 : vector<8x32xf32>
    %14 = arith.addf %8, %13 : vector<8x32xf32>
    %15 = vector.extract_strided_slice %2 {offsets = [0, 2], sizes = [8, 1], strides = [1, 1]} : vector<8x3xf32> to vector<8x1xf32>
    %16 = vector.extract_strided_slice %3 {offsets = [2, 0], sizes = [1, 32], strides = [1, 1]} : vector<3x32xf32> to vector<1x32xf32>
    %17 = vector.broadcast %15 : vector<8x1xf32> to vector<8x32xf32>
    %18 = vector.broadcast %16 : vector<1x32xf32> to vector<8x32xf32>
    %19 = arith.mulf %17, %18 : vector<8x32xf32>
    %20 = arith.addf %14, %19 : vector<8x32xf32>
    %c0_3 = arith.constant 0 : index
    %c0_4 = arith.constant 0 : index
    %21 = vector.load %arg3[%c0_3, %c0_4] : memref<1x32xf32, #tpu.memory_space<vmem>>, vector<1x32xf32>
    %22 = vector.broadcast %21 : vector<1x32xf32> to vector<8x32xf32>
    %23 = arith.addf %20, %22 : vector<8x32xf32>
    %c0_5 = arith.constant 0 : index
    %c0_6 = arith.constant 0 : index
    %24 = vector.load %arg4[%c0_5, %c0_6] : memref<1x32xf32, #tpu.memory_space<vmem>>, vector<1x32xf32>
    %c0_7 = arith.constant 0 : index
    %c0_8 = arith.constant 0 : index
    %25 = vector.load %arg5[%c0_7, %c0_8] : memref<1x32xf32, #tpu.memory_space<vmem>>, vector<1x32xf32>
    %cst = arith.constant dense<0.000000e+00> : vector<8xf32>
    %26 = vector.multi_reduction <add>, %23, %cst [1] : vector<8x32xf32> to vector<8xf32>
    %27 = vector.shape_cast %26 : vector<8xf32> to vector<8x1xf32>
    %28 = arith.mulf %23, %23 : vector<8x32xf32>
    %cst_9 = arith.constant dense<0.000000e+00> : vector<8xf32>
    %29 = vector.multi_reduction <add>, %28, %cst_9 [1] : vector<8x32xf32> to vector<8xf32>
    %30 = vector.shape_cast %29 : vector<8xf32> to vector<8x1xf32>
    %cst_10 = arith.constant 3.125000e-02 : f32
    %31 = vector.broadcast %cst_10 : f32 to vector<8x1xf32>
    %32 = arith.mulf %27, %31 : vector<8x1xf32>
    %cst_11 = arith.constant 3.125000e-02 : f32
    %33 = vector.broadcast %cst_11 : f32 to vector<8x1xf32>
    %34 = arith.mulf %30, %33 : vector<8x1xf32>
    %35 = arith.mulf %32, %32 : vector<8x1xf32>
    %36 = arith.subf %34, %35 : vector<8x1xf32>
    %cst_12 = arith.constant 0.000000e+00 : f32
    %37 = vector.broadcast %cst_12 : f32 to vector<8x1xf32>
    %38 = arith.maximumf %36, %37 : vector<8x1xf32>
    %cst_13 = arith.constant 9.99999974E-6 : f32
    %39 = vector.broadcast %cst_13 : f32 to vector<8x1xf32>
    %40 = arith.addf %38, %39 : vector<8x1xf32>
    %41 = math.rsqrt %40 : vector<8x1xf32>
    %42 = vector.broadcast %32 : vector<8x1xf32> to vector<8x32xf32>
    %43 = arith.subf %23, %42 : vector<8x32xf32>
    %44 = vector.broadcast %41 : vector<8x1xf32> to vector<8x32xf32>
    %45 = vector.broadcast %24 : vector<1x32xf32> to vector<8x32xf32>
    %46 = arith.mulf %44, %45 : vector<8x32xf32>
    %47 = arith.mulf %43, %46 : vector<8x32xf32>
    %48 = vector.broadcast %25 : vector<1x32xf32> to vector<8x32xf32>
    %49 = arith.addf %47, %48 : vector<8x32xf32>
    %cst_14 = arith.constant 0.000000e+00 : f32
    %50 = vector.broadcast %cst_14 : f32 to vector<8x32xf32>
    %51 = arith.maximumf %49, %50 : vector<8x32xf32>
    %c0_15 = arith.constant 0 : index
    %c0_16 = arith.constant 0 : index
    %52 = vector.load %arg6[%c0_15, %c0_16] : memref<32x32xf32, #tpu.memory_space<vmem>>, vector<32x32xf32>
    %cst_17 = arith.constant dense<0.000000e+00> : vector<8x32xf32>
    %53 = tpu.matmul %51, %52, %cst_17 {dimension_numbers = #tpu.dot_dimension_numbers<[1], [0], [0], [1], [0, 0, 1, 1], [], []>} : vector<8x32xf32>, vector<32x32xf32>, vector<8x32xf32> -> vector<8x32xf32>
    %c0_18 = arith.constant 0 : index
    %c0_19 = arith.constant 0 : index
    %54 = vector.load %arg7[%c0_18, %c0_19] : memref<1x32xf32, #tpu.memory_space<vmem>>, vector<1x32xf32>
    %55 = vector.broadcast %54 : vector<1x32xf32> to vector<8x32xf32>
    %56 = arith.addf %53, %55 : vector<8x32xf32>
    %c0_20 = arith.constant 0 : index
    %c0_21 = arith.constant 0 : index
    %57 = vector.load %arg8[%c0_20, %c0_21] : memref<1x32xf32, #tpu.memory_space<vmem>>, vector<1x32xf32>
    %c0_22 = arith.constant 0 : index
    %c0_23 = arith.constant 0 : index
    %58 = vector.load %arg9[%c0_22, %c0_23] : memref<1x32xf32, #tpu.memory_space<vmem>>, vector<1x32xf32>
    %cst_24 = arith.constant dense<0.000000e+00> : vector<8xf32>
    %59 = vector.multi_reduction <add>, %56, %cst_24 [1] : vector<8x32xf32> to vector<8xf32>
    %60 = vector.shape_cast %59 : vector<8xf32> to vector<8x1xf32>
    %61 = arith.mulf %56, %56 : vector<8x32xf32>
    %cst_25 = arith.constant dense<0.000000e+00> : vector<8xf32>
    %62 = vector.multi_reduction <add>, %61, %cst_25 [1] : vector<8x32xf32> to vector<8xf32>
    %63 = vector.shape_cast %62 : vector<8xf32> to vector<8x1xf32>
    %cst_26 = arith.constant 3.125000e-02 : f32
    %64 = vector.broadcast %cst_26 : f32 to vector<8x1xf32>
    %65 = arith.mulf %60, %64 : vector<8x1xf32>
    %cst_27 = arith.constant 3.125000e-02 : f32
    %66 = vector.broadcast %cst_27 : f32 to vector<8x1xf32>
    %67 = arith.mulf %63, %66 : vector<8x1xf32>
    %68 = arith.mulf %65, %65 : vector<8x1xf32>
    %69 = arith.subf %67, %68 : vector<8x1xf32>
    %cst_28 = arith.constant 0.000000e+00 : f32
    %70 = vector.broadcast %cst_28 : f32 to vector<8x1xf32>
    %71 = arith.maximumf %69, %70 : vector<8x1xf32>
    %cst_29 = arith.constant 9.99999974E-6 : f32
    %72 = vector.broadcast %cst_29 : f32 to vector<8x1xf32>
    %73 = arith.addf %71, %72 : vector<8x1xf32>
    %74 = math.rsqrt %73 : vector<8x1xf32>
    %75 = vector.broadcast %65 : vector<8x1xf32> to vector<8x32xf32>
    %76 = arith.subf %56, %75 : vector<8x32xf32>
    %77 = vector.broadcast %74 : vector<8x1xf32> to vector<8x32xf32>
    %78 = vector.broadcast %57 : vector<1x32xf32> to vector<8x32xf32>
    %79 = arith.mulf %77, %78 : vector<8x32xf32>
    %80 = arith.mulf %76, %79 : vector<8x32xf32>
    %81 = vector.broadcast %58 : vector<1x32xf32> to vector<8x32xf32>
    %82 = arith.addf %80, %81 : vector<8x32xf32>
    %cst_30 = arith.constant 0.000000e+00 : f32
    %83 = vector.broadcast %cst_30 : f32 to vector<8x32xf32>
    %84 = arith.maximumf %82, %83 : vector<8x32xf32>
    %c0_31 = arith.constant 0 : index
    %c0_32 = arith.constant 0 : index
    %85 = vector.load %arg10[%c0_31, %c0_32] : memref<32x32xf32, #tpu.memory_space<vmem>>, vector<32x32xf32>
    %cst_33 = arith.constant dense<0.000000e+00> : vector<8x32xf32>
    %86 = tpu.matmul %1, %85, %cst_33 {dimension_numbers = #tpu.dot_dimension_numbers<[1], [0], [0], [1], [0, 0, 1, 1], [], []>} : vector<8x32xf32>, vector<32x32xf32>, vector<8x32xf32> -> vector<8x32xf32>
    %c0_34 = arith.constant 0 : index
    %c0_35 = arith.constant 0 : index
    %87 = vector.load %arg11[%c0_34, %c0_35] : memref<32x32xf32, #tpu.memory_space<vmem>>, vector<32x32xf32>
    %cst_36 = arith.constant dense<0.000000e+00> : vector<8x32xf32>
    %88 = tpu.matmul %84, %87, %cst_36 {dimension_numbers = #tpu.dot_dimension_numbers<[1], [0], [0], [1], [0, 0, 1, 1], [], []>} : vector<8x32xf32>, vector<32x32xf32>, vector<8x32xf32> -> vector<8x32xf32>
    %89 = arith.addf %86, %88 : vector<8x32xf32>
    %c0_37 = arith.constant 0 : index
    %c0_38 = arith.constant 0 : index
    %90 = vector.load %arg12[%c0_37, %c0_38] : memref<1x32xf32, #tpu.memory_space<vmem>>, vector<1x32xf32>
    %91 = vector.broadcast %90 : vector<1x32xf32> to vector<8x32xf32>
    %92 = arith.addf %89, %91 : vector<8x32xf32>
    %c0_39 = arith.constant 0 : index
    %c0_40 = arith.constant 0 : index
    %93 = vector.load %arg13[%c0_39, %c0_40] : memref<1x32xf32, #tpu.memory_space<vmem>>, vector<1x32xf32>
    %c0_41 = arith.constant 0 : index
    %c0_42 = arith.constant 0 : index
    %94 = vector.load %arg14[%c0_41, %c0_42] : memref<1x32xf32, #tpu.memory_space<vmem>>, vector<1x32xf32>
    %cst_43 = arith.constant dense<0.000000e+00> : vector<8xf32>
    %95 = vector.multi_reduction <add>, %92, %cst_43 [1] : vector<8x32xf32> to vector<8xf32>
    %96 = vector.shape_cast %95 : vector<8xf32> to vector<8x1xf32>
    %97 = arith.mulf %92, %92 : vector<8x32xf32>
    %cst_44 = arith.constant dense<0.000000e+00> : vector<8xf32>
    %98 = vector.multi_reduction <add>, %97, %cst_44 [1] : vector<8x32xf32> to vector<8xf32>
    %99 = vector.shape_cast %98 : vector<8xf32> to vector<8x1xf32>
    %cst_45 = arith.constant 3.125000e-02 : f32
    %100 = vector.broadcast %cst_45 : f32 to vector<8x1xf32>
    %101 = arith.mulf %96, %100 : vector<8x1xf32>
    %cst_46 = arith.constant 3.125000e-02 : f32
    %102 = vector.broadcast %cst_46 : f32 to vector<8x1xf32>
    %103 = arith.mulf %99, %102 : vector<8x1xf32>
    %104 = arith.mulf %101, %101 : vector<8x1xf32>
    %105 = arith.subf %103, %104 : vector<8x1xf32>
    %cst_47 = arith.constant 0.000000e+00 : f32
    %106 = vector.broadcast %cst_47 : f32 to vector<8x1xf32>
    %107 = arith.maximumf %105, %106 : vector<8x1xf32>
    %cst_48 = arith.constant 9.99999974E-6 : f32
    %108 = vector.broadcast %cst_48 : f32 to vector<8x1xf32>
    %109 = arith.addf %107, %108 : vector<8x1xf32>
    %110 = math.rsqrt %109 : vector<8x1xf32>
    %111 = vector.broadcast %101 : vector<8x1xf32> to vector<8x32xf32>
    %112 = arith.subf %92, %111 : vector<8x32xf32>
    %113 = vector.broadcast %110 : vector<8x1xf32> to vector<8x32xf32>
    %114 = vector.broadcast %93 : vector<1x32xf32> to vector<8x32xf32>
    %115 = arith.mulf %113, %114 : vector<8x32xf32>
    %116 = arith.mulf %112, %115 : vector<8x32xf32>
    %117 = vector.broadcast %94 : vector<1x32xf32> to vector<8x32xf32>
    %118 = arith.addf %116, %117 : vector<8x32xf32>
    %cst_49 = arith.constant 0.000000e+00 : f32
    %119 = vector.broadcast %cst_49 : f32 to vector<8x32xf32>
    %120 = arith.maximumf %118, %119 : vector<8x32xf32>
    %c0_50 = arith.constant 0 : index
    %c0_51 = arith.constant 0 : index
    %121 = vector.load %arg15[%c0_50, %c0_51] : memref<32x32xf32, #tpu.memory_space<vmem>>, vector<32x32xf32>
    %cst_52 = arith.constant dense<0.000000e+00> : vector<8x32xf32>
    %122 = tpu.matmul %120, %121, %cst_52 {dimension_numbers = #tpu.dot_dimension_numbers<[1], [0], [0], [1], [0, 0, 1, 1], [], []>} : vector<8x32xf32>, vector<32x32xf32>, vector<8x32xf32> -> vector<8x32xf32>
    %c0_53 = arith.constant 0 : index
    %c0_54 = arith.constant 0 : index
    %123 = vector.load %arg16[%c0_53, %c0_54] : memref<1x32xf32, #tpu.memory_space<vmem>>, vector<1x32xf32>
    %124 = vector.broadcast %123 : vector<1x32xf32> to vector<8x32xf32>
    %125 = arith.addf %122, %124 : vector<8x32xf32>
    %c0_55 = arith.constant 0 : index
    %c0_56 = arith.constant 0 : index
    %126 = vector.load %arg17[%c0_55, %c0_56] : memref<1x32xf32, #tpu.memory_space<vmem>>, vector<1x32xf32>
    %c0_57 = arith.constant 0 : index
    %c0_58 = arith.constant 0 : index
    %127 = vector.load %arg18[%c0_57, %c0_58] : memref<1x32xf32, #tpu.memory_space<vmem>>, vector<1x32xf32>
    %cst_59 = arith.constant dense<0.000000e+00> : vector<8xf32>
    %128 = vector.multi_reduction <add>, %125, %cst_59 [1] : vector<8x32xf32> to vector<8xf32>
    %129 = vector.shape_cast %128 : vector<8xf32> to vector<8x1xf32>
    %130 = arith.mulf %125, %125 : vector<8x32xf32>
    %cst_60 = arith.constant dense<0.000000e+00> : vector<8xf32>
    %131 = vector.multi_reduction <add>, %130, %cst_60 [1] : vector<8x32xf32> to vector<8xf32>
    %132 = vector.shape_cast %131 : vector<8xf32> to vector<8x1xf32>
    %cst_61 = arith.constant 3.125000e-02 : f32
    %133 = vector.broadcast %cst_61 : f32 to vector<8x1xf32>
    %134 = arith.mulf %129, %133 : vector<8x1xf32>
    %cst_62 = arith.constant 3.125000e-02 : f32
    %135 = vector.broadcast %cst_62 : f32 to vector<8x1xf32>
    %136 = arith.mulf %132, %135 : vector<8x1xf32>
    %137 = arith.mulf %134, %134 : vector<8x1xf32>
    %138 = arith.subf %136, %137 : vector<8x1xf32>
    %cst_63 = arith.constant 0.000000e+00 : f32
    %139 = vector.broadcast %cst_63 : f32 to vector<8x1xf32>
    %140 = arith.maximumf %138, %139 : vector<8x1xf32>
    %cst_64 = arith.constant 9.99999974E-6 : f32
    %141 = vector.broadcast %cst_64 : f32 to vector<8x1xf32>
    %142 = arith.addf %140, %141 : vector<8x1xf32>
    %143 = math.rsqrt %142 : vector<8x1xf32>
    %144 = vector.broadcast %134 : vector<8x1xf32> to vector<8x32xf32>
    %145 = arith.subf %125, %144 : vector<8x32xf32>
    %146 = vector.broadcast %143 : vector<8x1xf32> to vector<8x32xf32>
    %147 = vector.broadcast %126 : vector<1x32xf32> to vector<8x32xf32>
    %148 = arith.mulf %146, %147 : vector<8x32xf32>
    %149 = arith.mulf %145, %148 : vector<8x32xf32>
    %150 = vector.broadcast %127 : vector<1x32xf32> to vector<8x32xf32>
    %151 = arith.addf %149, %150 : vector<8x32xf32>
    %cst_65 = arith.constant 0.000000e+00 : f32
    %152 = vector.broadcast %cst_65 : f32 to vector<8x32xf32>
    %153 = arith.maximumf %151, %152 : vector<8x32xf32>
    %c0_66 = arith.constant 0 : index
    %c0_67 = arith.constant 0 : index
    %154 = vector.load %arg19[%c0_66, %c0_67] : memref<32x16xf32, #tpu.memory_space<vmem>>, vector<32x16xf32>
    %cst_68 = arith.constant dense<0.000000e+00> : vector<8x16xf32>
    %155 = tpu.matmul %153, %154, %cst_68 {dimension_numbers = #tpu.dot_dimension_numbers<[1], [0], [0], [1], [0, 0, 1, 1], [], []>} : vector<8x32xf32>, vector<32x16xf32>, vector<8x16xf32> -> vector<8x16xf32>
    %c0_69 = arith.constant 0 : index
    %c0_70 = arith.constant 0 : index
    %156 = vector.load %arg20[%c0_69, %c0_70] : memref<1x16xf32, #tpu.memory_space<vmem>>, vector<1x16xf32>
    %157 = vector.broadcast %156 : vector<1x16xf32> to vector<8x16xf32>
    %158 = arith.addf %155, %157 : vector<8x16xf32>
    %c0_71 = arith.constant 0 : index
    %c0_72 = arith.constant 0 : index
    %159 = vector.load %arg21[%c0_71, %c0_72] : memref<8x16xf32, #tpu.memory_space<vmem>>, vector<8x16xf32>
    tpu.vector_store %arg21[%c0_71, %c0_72], %158 {strides = array<i32>} : memref<8x16xf32, #tpu.memory_space<vmem>>, vector<8x16xf32>,
    return
  }
  func.func @transform_0(%arg0: i32) -> (i32, i32) {
    %c0_i32 = arith.constant 0 : i32
    %c0_i32_0 = arith.constant 0 : i32
    return %arg0, %c0_i32 : i32, i32
  }
  func.func @transform_1(%arg0: i32) -> (i32, i32) {
    %c0_i32 = arith.constant 0 : i32
    %c0_i32_0 = arith.constant 0 : i32
    %c0_i32_1 = arith.constant 0 : i32
    return %c0_i32, %c0_i32_0 : i32, i32
  }
  func.func @transform_2(%arg0: i32) -> (i32, i32) {
    %c0_i32 = arith.constant 0 : i32
    %c0_i32_0 = arith.constant 0 : i32
    %c0_i32_1 = arith.constant 0 : i32
    return %c0_i32, %c0_i32_0 : i32, i32
  }
  func.func @transform_3(%arg0: i32) -> (i32, i32) {
    %c0_i32 = arith.constant 0 : i32
    %c0_i32_0 = arith.constant 0 : i32
    %c0_i32_1 = arith.constant 0 : i32
    return %c0_i32, %c0_i32_0 : i32, i32
  }
  func.func @transform_4(%arg0: i32) -> (i32, i32) {
    %c0_i32 = arith.constant 0 : i32
    %c0_i32_0 = arith.constant 0 : i32
    %c0_i32_1 = arith.constant 0 : i32
    return %c0_i32, %c0_i32_0 : i32, i32
  }
  func.func @transform_5(%arg0: i32) -> (i32, i32) {
    %c0_i32 = arith.constant 0 : i32
    %c0_i32_0 = arith.constant 0 : i32
    %c0_i32_1 = arith.constant 0 : i32
    return %c0_i32, %c0_i32_0 : i32, i32
  }
  func.func @transform_6(%arg0: i32) -> (i32, i32) {
    %c0_i32 = arith.constant 0 : i32
    %c0_i32_0 = arith.constant 0 : i32
    %c0_i32_1 = arith.constant 0 : i32
    return %c0_i32, %c0_i32_0 : i32, i32
  }
  func.func @transform_7(%arg0: i32) -> (i32, i32) {
    %c0_i32 = arith.constant 0 : i32
    %c0_i32_0 = arith.constant 0 : i32
    %c0_i32_1 = arith.constant 0 : i32
    return %c0_i32, %c0_i32_0 : i32, i32
  }
  func.func @transform_8(%arg0: i32) -> (i32, i32) {
    %c0_i32 = arith.constant 0 : i32
    %c0_i32_0 = arith.constant 0 : i32
    %c0_i32_1 = arith.constant 0 : i32
    return %c0_i32, %c0_i32_0 : i32, i32
  }
  func.func @transform_9(%arg0: i32) -> (i32, i32) {
    %c0_i32 = arith.constant 0 : i32
    %c0_i32_0 = arith.constant 0 : i32
    %c0_i32_1 = arith.constant 0 : i32
    return %c0_i32, %c0_i32_0 : i32, i32
  }
  func.func @transform_10(%arg0: i32) -> (i32, i32) {
    %c0_i32 = arith.constant 0 : i32
    %c0_i32_0 = arith.constant 0 : i32
    %c0_i32_1 = arith.constant 0 : i32
    return %c0_i32, %c0_i32_0 : i32, i32
  }
  func.func @transform_11(%arg0: i32) -> (i32, i32) {
    %c0_i32 = arith.constant 0 : i32
    %c0_i32_0 = arith.constant 0 : i32
    %c0_i32_1 = arith.constant 0 : i32
    return %c0_i32, %c0_i32_0 : i32, i32
  }
  func.func @transform_12(%arg0: i32) -> (i32, i32) {
    %c0_i32 = arith.constant 0 : i32
    %c0_i32_0 = arith.constant 0 : i32
    %c0_i32_1 = arith.constant 0 : i32
    return %c0_i32, %c0_i32_0 : i32, i32
  }
  func.func @transform_13(%arg0: i32) -> (i32, i32) {
    %c0_i32 = arith.constant 0 : i32
    %c0_i32_0 = arith.constant 0 : i32
    %c0_i32_1 = arith.constant 0 : i32
    return %c0_i32, %c0_i32_0 : i32, i32
  }
  func.func @transform_14(%arg0: i32) -> (i32, i32) {
    %c0_i32 = arith.constant 0 : i32
    %c0_i32_0 = arith.constant 0 : i32
    %c0_i32_1 = arith.constant 0 : i32
    return %c0_i32, %c0_i32_0 : i32, i32
  }
  func.func @transform_15(%arg0: i32) -> (i32, i32) {
    %c0_i32 = arith.constant 0 : i32
    %c0_i32_0 = arith.constant 0 : i32
    %c0_i32_1 = arith.constant 0 : i32
    return %c0_i32, %c0_i32_0 : i32, i32
  }
  func.func @transform_16(%arg0: i32) -> (i32, i32) {
    %c0_i32 = arith.constant 0 : i32
    %c0_i32_0 = arith.constant 0 : i32
    %c0_i32_1 = arith.constant 0 : i32
    return %c0_i32, %c0_i32_0 : i32, i32
  }
  func.func @transform_17(%arg0: i32) -> (i32, i32) {
    %c0_i32 = arith.constant 0 : i32
    %c0_i32_0 = arith.constant 0 : i32
    %c0_i32_1 = arith.constant 0 : i32
    return %c0_i32, %c0_i32_0 : i32, i32
  }
  func.func @transform_18(%arg0: i32) -> (i32, i32) {
    %c0_i32 = arith.constant 0 : i32
    %c0_i32_0 = arith.constant 0 : i32
    %c0_i32_1 = arith.constant 0 : i32
    return %c0_i32, %c0_i32_0 : i32, i32
  }
  func.func @transform_19(%arg0: i32) -> (i32, i32) {
    %c0_i32 = arith.constant 0 : i32
    %c0_i32_0 = arith.constant 0 : i32
    %c0_i32_1 = arith.constant 0 : i32
    return %c0_i32, %c0_i32_0 : i32, i32
  }
  func.func @transform_20(%arg0: i32) -> (i32, i32) {
    %c0_i32 = arith.constant 0 : i32
    %c0_i32_0 = arith.constant 0 : i32
    return %arg0, %c0_i32 : i32, i32
  }
}

</mosaic_0001>

<llo_original>
// kernel: tpu_custom_call.1
$region0: #{tpu_custom_call.1}
  #allocation0 [shape = 'u32[]', space=smem, size = 0x4, offset = 0x4, fixed_abs, tag = 'smem constant byte address 0x4 - core index']
  #allocation1 [shape = 'u32[144,128]{1,0:T(1,128)}', space=vmem, size = 0x12000, scoped, tag = 'internal scratch']
  %s0 = inlined_call_operand.hbm [shape: f32[8,35], index: 0, kind: input, shape index: {}]
  %s1 = inlined_call_operand.hbm [shape: f32[3,32], index: 1, kind: input, shape index: {}]
  %s2 = inlined_call_operand.hbm [shape: f32[1,32], index: 2, kind: input, shape index: {}]
  %s3 = inlined_call_operand.hbm [shape: f32[1,32], index: 3, kind: input, shape index: {}]
  %s4 = inlined_call_operand.hbm [shape: f32[1,32], index: 4, kind: input, shape index: {}]
  %s5 = inlined_call_operand.vmem [shape: f32[32,32], index: 5, kind: input, shape index: {}]
  %s6 = inlined_call_operand.hbm [shape: f32[1,32], index: 6, kind: input, shape index: {}]
  %s7 = inlined_call_operand.hbm [shape: f32[1,32], index: 7, kind: input, shape index: {}]
  %s8 = inlined_call_operand.hbm [shape: f32[1,32], index: 8, kind: input, shape index: {}]
  %s9 = inlined_call_operand.vmem [shape: f32[32,32], index: 9, kind: input, shape index: {}]
  %s10 = inlined_call_operand.hbm [shape: f32[32,32], index: 10, kind: input, shape index: {}]
  %s11 = inlined_call_operand.hbm [shape: f32[1,32], index: 11, kind: input, shape index: {}]
  %s12 = inlined_call_operand.hbm [shape: f32[1,32], index: 12, kind: input, shape index: {}]
  %s13 = inlined_call_operand.hbm [shape: f32[1,32], index: 13, kind: input, shape index: {}]
  %s14 = inlined_call_operand.vmem [shape: f32[32,32], index: 14, kind: input, shape index: {}]
  %s15 = inlined_call_operand.hbm [shape: f32[1,32], index: 15, kind: input, shape index: {}]
  %s16 = inlined_call_operand.hbm [shape: f32[1,32], index: 16, kind: input, shape index: {}]
  %s17 = inlined_call_operand.hbm [shape: f32[1,32], index: 17, kind: input, shape index: {}]
  %s18 = inlined_call_operand.vmem [shape: f32[32,16], index: 18, kind: input, shape index: {}]
  %s19 = inlined_call_operand.vmem [shape: f32[1,16], index: 19, kind: input, shape index: {}]
  %s20 = inlined_call_operand.hbm [shape: f32[8,16], index: 20, kind: output, shape index: {}]
  %s21 = sld [smem:[#allocation0]]
  $region150: #{tpu_custom_call.1} parent=0
    _
  %s23 = ssub.s32 1, %s21
  %s24 = scalar_select 0, %s23, %s21
  $region1: #{tpu_custom_call.1} parent=0
    #allocation2 [shape = 'u8[4096]{0}', space=vmem, size = 0x1000, scoped, tag = 'input window, operand 0, single buffered']
    #allocation3 [shape = 's32[1]{0}', space=sflag, size = 0x4, scoped, tag = 'scoped memory for tpu_custom_call.1']
    #allocation4 [shape = 's32[1]{0}', space=sflag, size = 0x4, scoped, tag = 'scoped memory for tpu_custom_call.1']
    #allocation5 [shape = 'u8[2048]{0}', space=vmem, size = 0x800, scoped, tag = 'input window, operand 1, single buffered']
    #allocation6 [shape = 's32[1]{0}', space=sflag, size = 0x4, scoped, tag = 'scoped memory for tpu_custom_call.1']
    #allocation7 [shape = 'u8[512]{0}', space=vmem, size = 0x400, scoped, tag = 'input window, operand 2, single buffered']
    #allocation8 [shape = 'u8[512]{0}', space=vmem, size = 0x400, scoped, tag = 'input window, operand 3, single buffered']
    #allocation9 [shape = 's32[1]{0}', space=sflag, size = 0x4, scoped, tag = 'scoped memory for tpu_custom_call.1']
    #allocation10 [shape = 'u8[512]{0}', space=vmem, size = 0x400, scoped, tag = 'input window, operand 4, single buffered']
    #allocation11 [shape = 'u8[512]{0}', space=vmem, size = 0x400, scoped, tag = 'input window, operand 6, single buffered']
    #allocation12 [shape = 's32[1]{0}', space=sflag, size = 0x4, scoped, tag = 'scoped memory for tpu_custom_call.1']
    #allocation13 [shape = 'u8[512]{0}', space=vmem, size = 0x400, scoped, tag = 'input window, operand 7, single buffered']
    #allocation14 [shape = 'u8[512]{0}', space=vmem, size = 0x400, scoped, tag = 'input window, operand 8, single buffered']
    #allocation15 [shape = 's32[1]{0}', space=sflag, size = 0x4, scoped, tag = 'scoped memory for tpu_custom_call.1']
    #allocation16 [shape = 'u8[16384]{0}', space=vmem, size = 0x4000, scoped, tag = 'input window, operand 10, single buffered']
    #allocation17 [shape = 'u8[512]{0}', space=vmem, size = 0x400, scoped, tag = 'input window, operand 11, single buffered']
    #allocation18 [shape = 's32[1]{0}', space=sflag, size = 0x4, scoped, tag = 'scoped memory for tpu_custom_call.1']
    #allocation19 [shape = 'u8[512]{0}', space=vmem, size = 0x400, scoped, tag = 'input window, operand 12, single buffered']
    #allocation20 [shape = 'u8[512]{0}', space=vmem, size = 0x400, scoped, tag = 'input window, operand 13, single buffered']
    #allocation21 [shape = 's32[1]{0}', space=sflag, size = 0x4, scoped, tag = 'scoped memory for tpu_custom_call.1']
    #allocation22 [shape = 'u8[512]{0}', space=vmem, size = 0x400, scoped, tag = 'input window, operand 15, single buffered']
    #allocation23 [shape = 'u8[512]{0}', space=vmem, size = 0x400, scoped, tag = 'input window, operand 16, single buffered']
    #allocation24 [shape = 's32[1]{0}', space=sflag, size = 0x4, scoped, tag = 'scoped memory for tpu_custom_call.1']
    #allocation25 [shape = 'u8[512]{0}', space=vmem, size = 0x400, scoped, tag = 'input window, operand 17, single buffered']
    #allocation26 [shape = 'u8[4096]{0}', space=vmem, size = 0x1000, scoped, tag = 'output window, operand 0, single buffered']
    %25 = vsyncpa [#allocation3], 0
    %26 = vsyncpa [#allocation6], 0
    %27 = vsyncpa [#allocation9], 0
    %28 = vsyncpa [#allocation12], 0
    %29 = vsyncpa [#allocation15], 0
    %30 = vsyncpa [#allocation18], 0
    %31 = vsyncpa [#allocation21], 0
    %32 = vsyncpa [#allocation24], 0
    %33 = vsyncpa [#allocation4], 0
    // Predicated region
    $region2: #{tpu_custom_call.1} parent=1 // pred_check
      _
    $region3: #{tpu_custom_call.1} parent=1 // pred_check_branch
      %35 = sbr.rel (0) target = $region5
    $region4: #{tpu_custom_call.1} parent=1 // pred_region
      %s37 = ssub.s32 128, 128
      %38 = vsyncadd [#allocation3], %s37
      %s40 = sshll.u32 [#allocation2], 4
      %s41 = int_to_ptr.vmem [resolvable:$true] %s40
      %43 = dma.hbm_to_vmem [thread:$0]  %s0, 128, %s41, [#allocation3]
    $region5: #{tpu_custom_call.1} parent=1 // pred_fallthru
      _
    // Predicated region
    $region6: #{tpu_custom_call.1} parent=1 // pred_check
      _
    $region7: #{tpu_custom_call.1} parent=1 // pred_check_branch
      %45 = sbr.rel (0) target = $region9
    $region8: #{tpu_custom_call.1} parent=1 // pred_region
      %s47 = ssub.s32 64, 64
      %48 = vsyncadd [#allocation6], %s47
      %s50 = sshll.u32 [#allocation5], 4
      %s51 = int_to_ptr.vmem [resolvable:$true] %s50
      %53 = dma.hbm_to_vmem [thread:$0]  %s1, 64, %s51, [#allocation6]
    $region9: #{tpu_custom_call.1} parent=1 // pred_fallthru
      _
    // Predicated region
    $region10: #{tpu_custom_call.1} parent=1 // pred_check
      _
    $region11: #{tpu_custom_call.1} parent=1 // pred_check_branch
      %55 = sbr.rel (0) target = $region13
    $region12: #{tpu_custom_call.1} parent=1 // pred_region
      %s57 = ssub.s32 16, 16
      %58 = vsyncadd [#allocation6], %s57
      %s60 = sshll.u32 [#allocation7], 4
      %s61 = int_to_ptr.vmem [resolvable:$true] %s60
      %63 = dma.hbm_to_vmem [thread:$0]  %s2, 16, %s61, [#allocation6]
    $region13: #{tpu_custom_call.1} parent=1 // pred_fallthru
      _
    // Predicated region
    $region14: #{tpu_custom_call.1} parent=1 // pred_check
      _
    $region15: #{tpu_custom_call.1} parent=1 // pred_check_branch
      %65 = sbr.rel (0) target = $region17
    $region16: #{tpu_custom_call.1} parent=1 // pred_region
      %s67 = ssub.s32 16, 16
      %68 = vsyncadd [#allocation9], %s67
      %s70 = sshll.u32 [#allocation8], 4
      %s71 = int_to_ptr.vmem [resolvable:$true] %s70
      %73 = dma.hbm_to_vmem [thread:$0]  %s3, 16, %s71, [#allocation9]
    $region17: #{tpu_custom_call.1} parent=1 // pred_fallthru
      _
    // Predicated region
    $region18: #{tpu_custom_call.1} parent=1 // pred_check
      _
    $region19: #{tpu_custom_call.1} parent=1 // pred_check_branch
      %75 = sbr.rel (0) target = $region21
    $region20: #{tpu_custom_call.1} parent=1 // pred_region
      %s77 = ssub.s32 16, 16
      %78 = vsyncadd [#allocation9], %s77
      %s80 = sshll.u32 [#allocation10], 4
      %s81 = int_to_ptr.vmem [resolvable:$true] %s80
      %83 = dma.hbm_to_vmem [thread:$0]  %s4, 16, %s81, [#allocation9]
    $region21: #{tpu_custom_call.1} parent=1 // pred_fallthru
      _
    // Predicated region
    $region22: #{tpu_custom_call.1} parent=1 // pred_check
      _
    $region23: #{tpu_custom_call.1} parent=1 // pred_check_branch
      %85 = sbr.rel (0) target = $region25
    $region24: #{tpu_custom_call.1} parent=1 // pred_region
      _
    $region25: #{tpu_custom_call.1} parent=1 // pred_fallthru
      _
    // Predicated region
    $region26: #{tpu_custom_call.1} parent=1 // pred_check
      _
    $region27: #{tpu_custom_call.1} parent=1 // pred_check_branch
      %87 = sbr.rel (0) target = $region29
    $region28: #{tpu_custom_call.1} parent=1 // pred_region
      %s89 = ssub.s32 16, 16
      %90 = vsyncadd [#allocation12], %s89
      %s92 = sshll.u32 [#allocation11], 4
      %s93 = int_to_ptr.vmem [resolvable:$true] %s92
      %95 = dma.hbm_to_vmem [thread:$0]  %s6, 16, %s93, [#allocation12]
    $region29: #{tpu_custom_call.1} parent=1 // pred_fallthru
      _
    // Predicated region
    $region30: #{tpu_custom_call.1} parent=1 // pred_check
      _
    $region31: #{tpu_custom_call.1} parent=1 // pred_check_branch
      %97 = sbr.rel (0) target = $region33
    $region32: #{tpu_custom_call.1} parent=1 // pred_region
      %s99 = ssub.s32 16, 16
      %100 = vsyncadd [#allocation12], %s99
      %s102 = sshll.u32 [#allocation13], 4
      %s103 = int_to_ptr.vmem [resolvable:$true] %s102
      %105 = dma.hbm_to_vmem [thread:$0]  %s7, 16, %s103, [#allocation12]
    $region33: #{tpu_custom_call.1} parent=1 // pred_fallthru
      _
    // Predicated region
    $region34: #{tpu_custom_call.1} parent=1 // pred_check
      _
    $region35: #{tpu_custom_call.1} parent=1 // pred_check_branch
      %107 = sbr.rel (0) target = $region37
    $region36: #{tpu_custom_call.1} parent=1 // pred_region
      %s109 = ssub.s32 16, 16
      %110 = vsyncadd [#allocation15], %s109
      %s112 = sshll.u32 [#allocation14], 4
      %s113 = int_to_ptr.vmem [resolvable:$true] %s112
      %115 = dma.hbm_to_vmem [thread:$0]  %s8, 16, %s113, [#allocation15]
    $region37: #{tpu_custom_call.1} parent=1 // pred_fallthru
      _
    // Predicated region
    $region38: #{tpu_custom_call.1} parent=1 // pred_check
      _
    $region39: #{tpu_custom_call.1} parent=1 // pred_check_branch
      %117 = sbr.rel (0) target = $region41
    $region40: #{tpu_custom_call.1} parent=1 // pred_region
      _
    $region41: #{tpu_custom_call.1} parent=1 // pred_fallthru
      _
    // Predicated region
    $region42: #{tpu_custom_call.1} parent=1 // pred_check
      _
    $region43: #{tpu_custom_call.1} parent=1 // pred_check_branch
      %119 = sbr.rel (0) target = $region45
    $region44: #{tpu_custom_call.1} parent=1 // pred_region
      %s121 = ssub.s32 512, 512
      %122 = vsyncadd [#allocation15], %s121
      %s123 = sshll.u32 [#allocation16], 4
      %s124 = int_to_ptr.vmem [resolvable:$true] %s123
      %129 = dma.hbm_to_vmem [thread:$0]  %s10, 512, %s124, [#allocation15], 128, 128, 8
    $region45: #{tpu_custom_call.1} parent=1 // pred_fallthru
      _
    // Predicated region
    $region46: #{tpu_custom_call.1} parent=1 // pred_check
      _
    $region47: #{tpu_custom_call.1} parent=1 // pred_check_branch
      %131 = sbr.rel (0) target = $region49
    $region48: #{tpu_custom_call.1} parent=1 // pred_region
      %s133 = ssub.s32 16, 16
      %134 = vsyncadd [#allocation18], %s133
      %s136 = sshll.u32 [#allocation17], 4
      %s137 = int_to_ptr.vmem [resolvable:$true] %s136
      %139 = dma.hbm_to_vmem [thread:$0]  %s11, 16, %s137, [#allocation18]
    $region49: #{tpu_custom_call.1} parent=1 // pred_fallthru
      _
    // Predicated region
    $region50: #{tpu_custom_call.1} parent=1 // pred_check
      _
    $region51: #{tpu_custom_call.1} parent=1 // pred_check_branch
      %141 = sbr.rel (0) target = $region53
    $region52: #{tpu_custom_call.1} parent=1 // pred_region
      %s143 = ssub.s32 16, 16
      %144 = vsyncadd [#allocation18], %s143
      %s146 = sshll.u32 [#allocation19], 4
      %s147 = int_to_ptr.vmem [resolvable:$true] %s146
      %149 = dma.hbm_to_vmem [thread:$0]  %s12, 16, %s147, [#allocation18]
    $region53: #{tpu_custom_call.1} parent=1 // pred_fallthru
      _
    // Predicated region
    $region54: #{tpu_custom_call.1} parent=1 // pred_check
      _
    $region55: #{tpu_custom_call.1} parent=1 // pred_check_branch
      %151 = sbr.rel (0) target = $region57
    $region56: #{tpu_custom_call.1} parent=1 // pred_region
      %s153 = ssub.s32 16, 16
      %154 = vsyncadd [#allocation21], %s153
      %s156 = sshll.u32 [#allocation20], 4
      %s157 = int_to_ptr.vmem [resolvable:$true] %s156
      %159 = dma.hbm_to_vmem [thread:$0]  %s13, 16, %s157, [#allocation21]
    $region57: #{tpu_custom_call.1} parent=1 // pred_fallthru
      _
    // Predicated region
    $region58: #{tpu_custom_call.1} parent=1 // pred_check
      _
    $region59: #{tpu_custom_call.1} parent=1 // pred_check_branch
      %161 = sbr.rel (0) target = $region61
    $region60: #{tpu_custom_call.1} parent=1 // pred_region
      _
    $region61: #{tpu_custom_call.1} parent=1 // pred_fallthru
      _
    // Predicated region
    $region62: #{tpu_custom_call.1} parent=1 // pred_check
      _
    $region63: #{tpu_custom_call.1} parent=1 // pred_check_branch
      %163 = sbr.rel (0) target = $region65
    $region64: #{tpu_custom_call.1} parent=1 // pred_region
      %s165 = ssub.s32 16, 16
      %166 = vsyncadd [#allocation21], %s165
      %s168 = sshll.u32 [#allocation22], 4
      %s169 = int_to_ptr.vmem [resolvable:$true] %s168
      %171 = dma.hbm_to_vmem [thread:$0]  %s15, 16, %s169, [#allocation21]
    $region65: #{tpu_custom_call.1} parent=1 // pred_fallthru
      _
    // Predicated region
    $region66: #{tpu_custom_call.1} parent=1 // pred_check
      _
    $region67: #{tpu_custom_call.1} parent=1 // pred_check_branch
      %173 = sbr.rel (0) target = $region69
    $region68: #{tpu_custom_call.1} parent=1 // pred_region
      %s175 = ssub.s32 16, 16
      %176 = vsyncadd [#allocation24], %s175
      %s178 = sshll.u32 [#allocation23], 4
      %s179 = int_to_ptr.vmem [resolvable:$true] %s178
      %181 = dma.hbm_to_vmem [thread:$0]  %s16, 16, %s179, [#allocation24]
    $region69: #{tpu_custom_call.1} parent=1 // pred_fallthru
      _
    // Predicated region
    $region70: #{tpu_custom_call.1} parent=1 // pred_check
      _
    $region71: #{tpu_custom_call.1} parent=1 // pred_check_branch
      %183 = sbr.rel (0) target = $region73
    $region72: #{tpu_custom_call.1} parent=1 // pred_region
      %s185 = ssub.s32 16, 16
      %186 = vsyncadd [#allocation24], %s185
      %s188 = sshll.u32 [#allocation25], 4
      %s189 = int_to_ptr.vmem [resolvable:$true] %s188
      %191 = dma.hbm_to_vmem [thread:$0]  %s17, 16, %s189, [#allocation24]
    $region73: #{tpu_custom_call.1} parent=1 // pred_fallthru
      _
    // Predicated region
    $region74: #{tpu_custom_call.1} parent=1 // pred_check
      _
    $region75: #{tpu_custom_call.1} parent=1 // pred_check_branch
      %193 = sbr.rel (0) target = $region77
    $region76: #{tpu_custom_call.1} parent=1 // pred_region
      _
    $region77: #{tpu_custom_call.1} parent=1 // pred_fallthru
      _
    // Predicated region
    $region78: #{tpu_custom_call.1} parent=1 // pred_check
      _
    $region79: #{tpu_custom_call.1} parent=1 // pred_check_branch
      %195 = sbr.rel (0) target = $region81
    $region80: #{tpu_custom_call.1} parent=1 // pred_region
      _
    $region81: #{tpu_custom_call.1} parent=1 // pred_fallthru
      _
    // Predicated region
    $region82: #{tpu_custom_call.1} parent=1 // pred_check
      _
    $region83: #{tpu_custom_call.1} parent=1 // pred_check_branch
      %197 = sbr.rel (0) target = $region85
    $region84: #{tpu_custom_call.1} parent=1 // pred_region
      %198 = dma.done [#allocation3], 128
    $region85: #{tpu_custom_call.1} parent=1 // pred_fallthru
      _
    // Predicated region
    $region86: #{tpu_custom_call.1} parent=1 // pred_check
      _
    $region87: #{tpu_custom_call.1} parent=1 // pred_check_branch
      %200 = sbr.rel (0) target = $region89
    $region88: #{tpu_custom_call.1} parent=1 // pred_region
      %201 = dma.done [#allocation6], 64
    $region89: #{tpu_custom_call.1} parent=1 // pred_fallthru
      _
    // Predicated region
    $region90: #{tpu_custom_call.1} parent=1 // pred_check
      _
    $region91: #{tpu_custom_call.1} parent=1 // pred_check_branch
      %203 = sbr.rel (0) target = $region93
    $region92: #{tpu_custom_call.1} parent=1 // pred_region
      %204 = dma.done [#allocation6], 16
    $region93: #{tpu_custom_call.1} parent=1 // pred_fallthru
      _
    // Predicated region
    $region94: #{tpu_custom_call.1} parent=1 // pred_check
      _
    $region95: #{tpu_custom_call.1} parent=1 // pred_check_branch
      %206 = sbr.rel (0) target = $region97
    $region96: #{tpu_custom_call.1} parent=1 // pred_region
      %207 = dma.done [#allocation9], 16
    $region97: #{tpu_custom_call.1} parent=1 // pred_fallthru
      _
    // Predicated region
    $region98: #{tpu_custom_call.1} parent=1 // pred_check
      _
    $region99: #{tpu_custom_call.1} parent=1 // pred_check_branch
      %209 = sbr.rel (0) target = $region101
    $region100: #{tpu_custom_call.1} parent=1 // pred_region
      %210 = dma.done [#allocation9], 16
    $region101: #{tpu_custom_call.1} parent=1 // pred_fallthru
      _
    // Predicated region
    $region102: #{tpu_custom_call.1} parent=1 // pred_check
      _
    $region103: #{tpu_custom_call.1} parent=1 // pred_check_branch
      %212 = sbr.rel (0) target = $region105
    $region104: #{tpu_custom_call.1} parent=1 // pred_region
      %213 = dma.done [#allocation12], 16
    $region105: #{tpu_custom_call.1} parent=1 // pred_fallthru
      _
    // Predicated region
    $region106: #{tpu_custom_call.1} parent=1 // pred_check
      _
    $region107: #{tpu_custom_call.1} parent=1 // pred_check_branch
      %215 = sbr.rel (0) target = $region109
    $region108: #{tpu_custom_call.1} parent=1 // pred_region
      %216 = dma.done [#allocation12], 16
    $region109: #{tpu_custom_call.1} parent=1 // pred_fallthru
      _
    // Predicated region
    $region110: #{tpu_custom_call.1} parent=1 // pred_check
      _
    $region111: #{tpu_custom_call.1} parent=1 // pred_check_branch
      %218 = sbr.rel (0) target = $region113
    $region112: #{tpu_custom_call.1} parent=1 // pred_region
      %219 = dma.done [#allocation15], 16
    $region113: #{tpu_custom_call.1} parent=1 // pred_fallthru
      _
    // Predicated region
    $region114: #{tpu_custom_call.1} parent=1 // pred_check
      _
    $region115: #{tpu_custom_call.1} parent=1 // pred_check_branch
      %221 = sbr.rel (0) target = $region117
    $region116: #{tpu_custom_call.1} parent=1 // pred_region
      %222 = dma.done [#allocation15], 512
    $region117: #{tpu_custom_call.1} parent=1 // pred_fallthru
      _
    // Predicated region
    $region118: #{tpu_custom_call.1} parent=1 // pred_check
      _
    $region119: #{tpu_custom_call.1} parent=1 // pred_check_branch
      %224 = sbr.rel (0) target = $region121
    $region120: #{tpu_custom_call.1} parent=1 // pred_region
      %225 = dma.done [#allocation18], 16
    $region121: #{tpu_custom_call.1} parent=1 // pred_fallthru
      _
    // Predicated region
    $region122: #{tpu_custom_call.1} parent=1 // pred_check
      _
    $region123: #{tpu_custom_call.1} parent=1 // pred_check_branch
      %227 = sbr.rel (0) target = $region125
    $region124: #{tpu_custom_call.1} parent=1 // pred_region
      %228 = dma.done [#allocation18], 16
    $region125: #{tpu_custom_call.1} parent=1 // pred_fallthru
      _
    // Predicated region
    $region126: #{tpu_custom_call.1} parent=1 // pred_check
      _
    $region127: #{tpu_custom_call.1} parent=1 // pred_check_branch
      %230 = sbr.rel (0) target = $region129
    $region128: #{tpu_custom_call.1} parent=1 // pred_region
      %231 = dma.done [#allocation21], 16
    $region129: #{tpu_custom_call.1} parent=1 // pred_fallthru
      _
    // Predicated region
    $region130: #{tpu_custom_call.1} parent=1 // pred_check
      _
    $region131: #{tpu_custom_call.1} parent=1 // pred_check_branch
      %233 = sbr.rel (0) target = $region133
    $region132: #{tpu_custom_call.1} parent=1 // pred_region
      %234 = dma.done [#allocation21], 16
    $region133: #{tpu_custom_call.1} parent=1 // pred_fallthru
      _
    // Predicated region
    $region134: #{tpu_custom_call.1} parent=1 // pred_check
      _
    $region135: #{tpu_custom_call.1} parent=1 // pred_check_branch
      %236 = sbr.rel (0) target = $region137
    $region136: #{tpu_custom_call.1} parent=1 // pred_region
      %237 = dma.done [#allocation24], 16
    $region137: #{tpu_custom_call.1} parent=1 // pred_fallthru
      _
    // Predicated region
    $region138: #{tpu_custom_call.1} parent=1 // pred_check
      _
    $region139: #{tpu_custom_call.1} parent=1 // pred_check_branch
      %239 = sbr.rel (0) target = $region141
    $region140: #{tpu_custom_call.1} parent=1 // pred_region
      %240 = dma.done [#allocation24], 16
    $region141: #{tpu_custom_call.1} parent=1 // pred_fallthru
      _
    %v241 = vld [vmem:[#allocation2] sm:$0xff]
    %v242 = vld [vmem:[#allocation5] sm:$0x7]
    %244 = vset.pattern.permute.xlu0 32
    %245 = vperm.xlu0 %244, %v241
    %v246 = vpop.permute.xlu0 %245
    %v248 = vlaneseq
    %v249 = vshrl.u32 %v248, 7
    %v250 = vsub.s32 0, %v249
    %v251 = vrot.slane %v242, %v250
    %v252 = vmul.f32 %v246, %v251
    %253 = vset.pattern.permute.xlu0 33
    %254 = vperm.xlu0 %253, %v241
    %v255 = vpop.permute.xlu0 %254
    %v257 = vlaneseq
    %v258 = vshrl.u32 %v257, 7
    %v259 = vsub.s32 1, %v258
    %v260 = vrot.slane %v242, %v259
    %v261 = vmul.f32 %v255, %v260
    %v262 = vadd.f32 %v252, %v261
    %263 = vset.pattern.permute.xlu0 34
    %264 = vperm.xlu0 %263, %v241
    %v265 = vpop.permute.xlu0 %264
    %v267 = vlaneseq
    %v268 = vshrl.u32 %v267, 7
    %v269 = vsub.s32 2, %v268
    %v270 = vrot.slane %v242, %v269
    %v271 = vmul.f32 %v265, %v270
    %v272 = vadd.f32 %v262, %v271
    %v273 = vld [vmem:[#allocation7] sm:$0x1]
    %v275 = vlaneseq
    %v276 = vshrl.u32 %v275, 7
    %v277 = vsub.s32 0, %v276
    %v278 = vrot.slane %v273, %v277
    %v280 = vadd.f32 %v272, %v278
    %v281 = vld [vmem:[#allocation8] sm:$0x1]
    %v282 = vld [vmem:[#allocation10] sm:$0x1]
    %vm283 = vcmask 261120
    %v284 = vsel %vm283, %v280, 0.0
    %285 = vadd.xlane.f32.xlu0 %v284
    %v286 = vpop.xlane.xlu0 %285
    %v287 = vmul.f32 %v280, %v280
    %v288 = vsel %vm283, %v287, 0.0
    %289 = vadd.xlane.f32.xlu0 %v288
    %v290 = vpop.xlane.xlu0 %289
    %v291 = vmul.f32 %v286, 0.03125
    %v292 = vmul.f32 %v290, 0.03125
    %v293 = vmul.f32 %v291, %v291
    %v294 = vsub.f32 %v292, %v293
    %v295 = vmax.f32 %v294, 0.0
    %v296 = vadd.f32 %v295, 1e-05
    %v297 = vrsqrt.pop %v296
    %v298 = vsub.f32 %v280, %v291
    %v300 = vlaneseq
    %v301 = vshrl.u32 %v300, 7
    %v302 = vsub.s32 0, %v301
    %v303 = vrot.slane %v281, %v302
    %v305 = vmul.f32 %v297, %v303
    %v306 = vmul.f32 %v298, %v305
    %v308 = vlaneseq
    %v309 = vshrl.u32 %v308, 7
    %v310 = vsub.s32 0, %v309
    %v311 = vrot.slane %v282, %v310
    %v313 = vadd.f32 %v306, %v311
    %v314 = vmax.f32 %v313, 0.0
    %v315 = vld [vmem:[%s5] sm:$0xff]
    %v316 = vld [vmem:[%s5 + $0x8] sm:$0xff]
    %v317 = vld [vmem:[%s5 + $0x10] sm:$0xff]
    %v318 = vld [vmem:[%s5 + $0x18] sm:$0xff]
    %v319 = vld [vmem:[#allocation11] sm:$0x1]
    %v321 = vlaneseq
    %v322 = vshrl.u32 %v321, 7
    %v323 = vsub.s32 0, %v322
    %v324 = vrot.slane %v319, %v323
    %v327 = vsel %vm283, %v314, 0
    %329 = vmatprep.subr.mxu0 0.0
    %330 = vmatpush1.msra.mxu0 %v315
    %331 = vmatprep.subr.mxu0 0.0
    %332 = vmatpush1.msra.mxu0 %v316
    %333 = vmatprep.subr.mxu0 0.0
    %334 = vmatpush1.msra.mxu0 %v317
    %335 = vmatprep.subr.mxu0 0.0
    %336 = vmatpush1.msra.mxu0 %v318
    %337 = vmatprep.subr.mxu0 0.0
    %338 = vmatpush1.msra.mxu0 0.0
    %339 = vmatprep.subr.mxu0 0.0
    %340 = vmatpush1.msra.mxu0 0.0
    %341 = vmatprep.subr.mxu0 0.0
    %342 = vmatpush1.msra.mxu0 0.0
    %343 = vmatprep.subr.mxu0 0.0
    %344 = vmatpush1.msra.mxu0 0.0
    %345 = vmatprep.subr.mxu0 0.0
    %346 = vmatpush1.msra.mxu0 0.0
    %347 = vmatprep.subr.mxu0 0.0
    %348 = vmatpush1.msra.mxu0 0.0
    %349 = vmatprep.subr.mxu0 0.0
    %350 = vmatpush1.msra.mxu0 0.0
    %351 = vmatprep.subr.mxu0 0.0
    %352 = vmatpush1.msra.mxu0 0.0
    %353 = vmatprep.subr.mxu0 0.0
    %354 = vmatpush1.msra.mxu0 0.0
    %355 = vmatprep.subr.mxu0 0.0
    %356 = vmatpush1.msra.mxu0 0.0
    %357 = vmatprep.subr.mxu0 0.0
    %358 = vmatpush1.msra.mxu0 0.0
    %359 = vmatprep.subr.mxu0 0.0
    %360 = vmatpush1.msra.mxu0 0.0
    %361 = vmatprep.subr.mxu0 0.0
    %362 = vmatpush1.msra.mxu0 0.0
    %363 = vmatprep.subr.mxu0 0.0
    %364 = vmatpush1.msra.mxu0 0.0
    %365 = vmatprep.subr.mxu0 0.0
    %366 = vmatpush1.msra.mxu0 0.0
    %367 = vmatprep.subr.mxu0 0.0
    %368 = vmatpush1.msra.mxu0 0.0
    %369 = vmatprep.subr.mxu0 0.0
    %370 = vmatpush1.msra.mxu0 0.0
    %371 = vmatprep.subr.mxu0 0.0
    %372 = vmatpush1.msra.mxu0 0.0
    %373 = vmatprep.subr.mxu0 0.0
    %374 = vmatpush1.msra.mxu0 0.0
    %375 = vmatprep.subr.mxu0 0.0
    %376 = vmatpush1.msra.mxu0 0.0
    %377 = vmatprep.subr.mxu0 0.0
    %378 = vmatpush1.msra.mxu0 0.0
    %379 = vmatprep.subr.mxu0 0.0
    %380 = vmatpush1.msra.mxu0 0.0
    %381 = vmatprep.subr.mxu0 0.0
    %382 = vmatpush1.msra.mxu0 0.0
    %383 = vmatprep.subr.mxu0 0.0
    %384 = vmatpush1.msra.mxu0 0.0
    %385 = vmatprep.subr.mxu0 0.0
    %386 = vmatpush1.msra.mxu0 0.0
    %387 = vmatprep.subr.mxu0 0.0
    %388 = vmatpush1.msra.mxu0 0.0
    %389 = vmatprep.subr.mxu0 0.0
    %390 = vmatpush1.msra.mxu0 0.0
    %391 = vmatprep.subr.mxu0 0.0
    %392 = vmatpush1.msra.mxu0 0.0
    %393 = vmatprep.mubr.f32.mxu0 0.0
    %394 = vmatmul.mubr.f32.gmra.mrb[0].mxu0 %v327
    %v395 = vpop.f32.mrb[0].mxu0
    %v396 = vadd.f32 %v324, %v395
    %v397 = vpop.f32.mrb[0].mxu0
    %398 = vdwg.mxu0
    %v399 = vld [vmem:[#allocation13] sm:$0x1]
    %v400 = vld [vmem:[#allocation14] sm:$0x1]
    %v401 = vsel %vm283, %v396, 0.0
    %402 = vadd.xlane.f32.xlu0 %v401
    %v403 = vpop.xlane.xlu0 %402
    %v404 = vmul.f32 %v396, %v396
    %v405 = vsel %vm283, %v404, 0.0
    %406 = vadd.xlane.f32.xlu0 %v405
    %v407 = vpop.xlane.xlu0 %406
    %v408 = vmul.f32 %v403, 0.03125
    %v409 = vmul.f32 %v407, 0.03125
    %v410 = vmul.f32 %v408, %v408
    %v411 = vsub.f32 %v409, %v410
    %v412 = vmax.f32 %v411, 0.0
    %v413 = vadd.f32 %v412, 1e-05
    %v414 = vrsqrt.pop %v413
    %v415 = vsub.f32 %v396, %v408
    %v417 = vlaneseq
    %v418 = vshrl.u32 %v417, 7
    %v419 = vsub.s32 0, %v418
    %v420 = vrot.slane %v399, %v419
    %v422 = vmul.f32 %v414, %v420
    %v423 = vmul.f32 %v415, %v422
    %v425 = vlaneseq
    %v426 = vshrl.u32 %v425, 7
    %v427 = vsub.s32 0, %v426
    %v428 = vrot.slane %v400, %v427
    %v430 = vadd.f32 %v423, %v428
    %v431 = vmax.f32 %v430, 0.0
    %v432 = vld [vmem:[%s9] sm:$0xff]
    %v433 = vld [vmem:[%s9 + $0x8] sm:$0xff]
    %v434 = vld [vmem:[%s9 + $0x10] sm:$0xff]
    %v435 = vld [vmem:[%s9 + $0x18] sm:$0xff]
    %v436 = vld [vmem:[#allocation16] sm:$0xff]
    %v437 = vld [vmem:[#allocation16 + $0x8] sm:$0xff]
    %v438 = vld [vmem:[#allocation16 + $0x10] sm:$0xff]
    %v439 = vld [vmem:[#allocation16 + $0x18] sm:$0xff]
    %v441 = vsel %vm283, %v431, 0
    %443 = vmatprep.subr.mxu0 0.0
    %444 = vmatpush1.msra.mxu0 %v436
    %445 = vmatprep.subr.mxu0 0.0
    %446 = vmatpush1.msra.mxu0 %v437
    %447 = vmatprep.subr.mxu0 0.0
    %448 = vmatpush1.msra.mxu0 %v438
    %449 = vmatprep.subr.mxu0 0.0
    %450 = vmatpush1.msra.mxu0 %v439
    %451 = vmatprep.subr.mxu0 0.0
    %452 = vmatpush1.msra.mxu0 0.0
    %453 = vmatprep.subr.mxu0 0.0
    %454 = vmatpush1.msra.mxu0 0.0
    %455 = vmatprep.subr.mxu0 0.0
    %456 = vmatpush1.msra.mxu0 0.0
    %457 = vmatprep.subr.mxu0 0.0
    %458 = vmatpush1.msra.mxu0 0.0
    %459 = vmatprep.subr.mxu0 0.0
    %460 = vmatpush1.msra.mxu0 0.0
    %461 = vmatprep.subr.mxu0 0.0
    %462 = vmatpush1.msra.mxu0 0.0
    %463 = vmatprep.subr.mxu0 0.0
    %464 = vmatpush1.msra.mxu0 0.0
    %465 = vmatprep.subr.mxu0 0.0
    %466 = vmatpush1.msra.mxu0 0.0
    %467 = vmatprep.subr.mxu0 0.0
    %468 = vmatpush1.msra.mxu0 0.0
    %469 = vmatprep.subr.mxu0 0.0
    %470 = vmatpush1.msra.mxu0 0.0
    %471 = vmatprep.subr.mxu0 0.0
    %472 = vmatpush1.msra.mxu0 0.0
    %473 = vmatprep.subr.mxu0 0.0
    %474 = vmatpush1.msra.mxu0 0.0
    %475 = vmatprep.subr.mxu0 0.0
    %476 = vmatpush1.msra.mxu0 0.0
    %477 = vmatprep.subr.mxu0 0.0
    %478 = vmatpush1.msra.mxu0 0.0
    %479 = vmatprep.subr.mxu0 0.0
    %480 = vmatpush1.msra.mxu0 0.0
    %481 = vmatprep.subr.mxu0 0.0
    %482 = vmatpush1.msra.mxu0 0.0
    %483 = vmatprep.subr.mxu0 0.0
    %484 = vmatpush1.msra.mxu0 0.0
    %485 = vmatprep.subr.mxu0 0.0
    %486 = vmatpush1.msra.mxu0 0.0
    %487 = vmatprep.subr.mxu0 0.0
    %488 = vmatpush1.msra.mxu0 0.0
    %489 = vmatprep.subr.mxu0 0.0
    %490 = vmatpush1.msra.mxu0 0.0
    %491 = vmatprep.subr.mxu0 0.0
    %492 = vmatpush1.msra.mxu0 0.0
    %493 = vmatprep.subr.mxu0 0.0
    %494 = vmatpush1.msra.mxu0 0.0
    %495 = vmatprep.subr.mxu0 0.0
    %496 = vmatpush1.msra.mxu0 0.0
    %497 = vmatprep.subr.mxu0 0.0
    %498 = vmatpush1.msra.mxu0 0.0
    %499 = vmatprep.subr.mxu0 0.0
    %500 = vmatpush1.msra.mxu0 0.0
    %501 = vmatprep.subr.mxu0 0.0
    %502 = vmatpush1.msra.mxu0 0.0
    %503 = vmatprep.subr.mxu0 0.0
    %504 = vmatpush1.msra.mxu0 0.0
    %505 = vmatprep.subr.mxu0 0.0
    %506 = vmatpush1.msra.mxu0 0.0
    %507 = vmatprep.mubr.f32.mxu0 0.0
    %508 = vmatmul.mubr.f32.gmra.mrb[0].mxu0 %v441
    %v509 = vpop.f32.mrb[0].mxu0
    %v510 = vadd.f32 0.0, %v509
    %v511 = vpop.f32.mrb[0].mxu0
    %512 = vdwg.mxu0
    %v513 = vsel %vm283, %v241, 0
    %515 = vmatprep.subr.mxu0 0.0
    %516 = vmatpush1.msra.mxu0 %v432
    %517 = vmatprep.subr.mxu0 0.0
    %518 = vmatpush1.msra.mxu0 %v433
    %519 = vmatprep.subr.mxu0 0.0
    %520 = vmatpush1.msra.mxu0 %v434
    %521 = vmatprep.subr.mxu0 0.0
    %522 = vmatpush1.msra.mxu0 %v435
    %523 = vmatprep.subr.mxu0 0.0
    %524 = vmatpush1.msra.mxu0 0.0
    %525 = vmatprep.subr.mxu0 0.0
    %526 = vmatpush1.msra.mxu0 0.0
    %527 = vmatprep.subr.mxu0 0.0
    %528 = vmatpush1.msra.mxu0 0.0
    %529 = vmatprep.subr.mxu0 0.0
    %530 = vmatpush1.msra.mxu0 0.0
    %531 = vmatprep.subr.mxu0 0.0
    %532 = vmatpush1.msra.mxu0 0.0
    %533 = vmatprep.subr.mxu0 0.0
    %534 = vmatpush1.msra.mxu0 0.0
    %535 = vmatprep.subr.mxu0 0.0
    %536 = vmatpush1.msra.mxu0 0.0
    %537 = vmatprep.subr.mxu0 0.0
    %538 = vmatpush1.msra.mxu0 0.0
    %539 = vmatprep.subr.mxu0 0.0
    %540 = vmatpush1.msra.mxu0 0.0
    %541 = vmatprep.subr.mxu0 0.0
    %542 = vmatpush1.msra.mxu0 0.0
    %543 = vmatprep.subr.mxu0 0.0
    %544 = vmatpush1.msra.mxu0 0.0
    %545 = vmatprep.subr.mxu0 0.0
    %546 = vmatpush1.msra.mxu0 0.0
    %547 = vmatprep.subr.mxu0 0.0
    %548 = vmatpush1.msra.mxu0 0.0
    %549 = vmatprep.subr.mxu0 0.0
    %550 = vmatpush1.msra.mxu0 0.0
    %551 = vmatprep.subr.mxu0 0.0
    %552 = vmatpush1.msra.mxu0 0.0
    %553 = vmatprep.subr.mxu0 0.0
    %554 = vmatpush1.msra.mxu0 0.0
    %555 = vmatprep.subr.mxu0 0.0
    %556 = vmatpush1.msra.mxu0 0.0
    %557 = vmatprep.subr.mxu0 0.0
    %558 = vmatpush1.msra.mxu0 0.0
    %559 = vmatprep.subr.mxu0 0.0
    %560 = vmatpush1.msra.mxu0 0.0
    %561 = vmatprep.subr.mxu0 0.0
    %562 = vmatpush1.msra.mxu0 0.0
    %563 = vmatprep.subr.mxu0 0.0
    %564 = vmatpush1.msra.mxu0 0.0
    %565 = vmatprep.subr.mxu0 0.0
    %566 = vmatpush1.msra.mxu0 0.0
    %567 = vmatprep.subr.mxu0 0.0
    %568 = vmatpush1.msra.mxu0 0.0
    %569 = vmatprep.subr.mxu0 0.0
    %570 = vmatpush1.msra.mxu0 0.0
    %571 = vmatprep.subr.mxu0 0.0
    %572 = vmatpush1.msra.mxu0 0.0
    %573 = vmatprep.subr.mxu0 0.0
    %574 = vmatpush1.msra.mxu0 0.0
    %575 = vmatprep.subr.mxu0 0.0
    %576 = vmatpush1.msra.mxu0 0.0
    %577 = vmatprep.subr.mxu0 0.0
    %578 = vmatpush1.msra.mxu0 0.0
    %579 = vmatprep.mubr.f32.mxu0 0.0
    %580 = vmatmul.mubr.f32.gmra.mrb[0].mxu0 %v513
    %v581 = vpop.f32.mrb[0].mxu0
    %v582 = vadd.f32 %v510, %v581
    %v583 = vpop.f32.mrb[0].mxu0
    %584 = vdwg.mxu0
    %v585 = vld [vmem:[#allocation17] sm:$0x1]
    %v587 = vlaneseq
    %v588 = vshrl.u32 %v587, 7
    %v589 = vsub.s32 0, %v588
    %v590 = vrot.slane %v585, %v589
    %v592 = vadd.f32 %v582, %v590
    %v593 = vld [vmem:[#allocation19] sm:$0x1]
    %v594 = vld [vmem:[#allocation20] sm:$0x1]
    %v595 = vsel %vm283, %v592, 0.0
    %596 = vadd.xlane.f32.xlu0 %v595
    %v597 = vpop.xlane.xlu0 %596
    %v598 = vmul.f32 %v592, %v592
    %v599 = vsel %vm283, %v598, 0.0
    %600 = vadd.xlane.f32.xlu0 %v599
    %v601 = vpop.xlane.xlu0 %600
    %v602 = vmul.f32 %v597, 0.03125
    %v603 = vmul.f32 %v601, 0.03125
    %v604 = vmul.f32 %v602, %v602
    %v605 = vsub.f32 %v603, %v604
    %v606 = vmax.f32 %v605, 0.0
    %v607 = vadd.f32 %v606, 1e-05
    %v608 = vrsqrt.pop %v607
    %v609 = vsub.f32 %v592, %v602
    %v611 = vlaneseq
    %v612 = vshrl.u32 %v611, 7
    %v613 = vsub.s32 0, %v612
    %v614 = vrot.slane %v593, %v613
    %v616 = vmul.f32 %v608, %v614
    %v617 = vmul.f32 %v609, %v616
    %v619 = vlaneseq
    %v620 = vshrl.u32 %v619, 7
    %v621 = vsub.s32 0, %v620
    %v622 = vrot.slane %v594, %v621
    %v624 = vadd.f32 %v617, %v622
    %v625 = vmax.f32 %v624, 0.0
    %v626 = vld [vmem:[%s14] sm:$0xff]
    %v627 = vld [vmem:[%s14 + $0x8] sm:$0xff]
    %v628 = vld [vmem:[%s14 + $0x10] sm:$0xff]
    %v629 = vld [vmem:[%s14 + $0x18] sm:$0xff]
    %v630 = vld [vmem:[#allocation22] sm:$0x1]
    %v632 = vlaneseq
    %v633 = vshrl.u32 %v632, 7
    %v634 = vsub.s32 0, %v633
    %v635 = vrot.slane %v630, %v634
    %v638 = vsel %vm283, %v625, 0
    %640 = vmatprep.subr.mxu0 0.0
    %641 = vmatpush1.msra.mxu0 %v626
    %642 = vmatprep.subr.mxu0 0.0
    %643 = vmatpush1.msra.mxu0 %v627
    %644 = vmatprep.subr.mxu0 0.0
    %645 = vmatpush1.msra.mxu0 %v628
    %646 = vmatprep.subr.mxu0 0.0
    %647 = vmatpush1.msra.mxu0 %v629
    %648 = vmatprep.subr.mxu0 0.0
    %649 = vmatpush1.msra.mxu0 0.0
    %650 = vmatprep.subr.mxu0 0.0
    %651 = vmatpush1.msra.mxu0 0.0
    %652 = vmatprep.subr.mxu0 0.0
    %653 = vmatpush1.msra.mxu0 0.0
    %654 = vmatprep.subr.mxu0 0.0
    %655 = vmatpush1.msra.mxu0 0.0
    %656 = vmatprep.subr.mxu0 0.0
    %657 = vmatpush1.msra.mxu0 0.0
    %658 = vmatprep.subr.mxu0 0.0
    %659 = vmatpush1.msra.mxu0 0.0
    %660 = vmatprep.subr.mxu0 0.0
    %661 = vmatpush1.msra.mxu0 0.0
    %662 = vmatprep.subr.mxu0 0.0
    %663 = vmatpush1.msra.mxu0 0.0
    %664 = vmatprep.subr.mxu0 0.0
    %665 = vmatpush1.msra.mxu0 0.0
    %666 = vmatprep.subr.mxu0 0.0
    %667 = vmatpush1.msra.mxu0 0.0
    %668 = vmatprep.subr.mxu0 0.0
    %669 = vmatpush1.msra.mxu0 0.0
    %670 = vmatprep.subr.mxu0 0.0
    %671 = vmatpush1.msra.mxu0 0.0
    %672 = vmatprep.subr.mxu0 0.0
    %673 = vmatpush1.msra.mxu0 0.0
    %674 = vmatprep.subr.mxu0 0.0
    %675 = vmatpush1.msra.mxu0 0.0
    %676 = vmatprep.subr.mxu0 0.0
    %677 = vmatpush1.msra.mxu0 0.0
    %678 = vmatprep.subr.mxu0 0.0
    %679 = vmatpush1.msra.mxu0 0.0
    %680 = vmatprep.subr.mxu0 0.0
    %681 = vmatpush1.msra.mxu0 0.0
    %682 = vmatprep.subr.mxu0 0.0
    %683 = vmatpush1.msra.mxu0 0.0
    %684 = vmatprep.subr.mxu0 0.0
    %685 = vmatpush1.msra.mxu0 0.0
    %686 = vmatprep.subr.mxu0 0.0
    %687 = vmatpush1.msra.mxu0 0.0
    %688 = vmatprep.subr.mxu0 0.0
    %689 = vmatpush1.msra.mxu0 0.0
    %690 = vmatprep.subr.mxu0 0.0
    %691 = vmatpush1.msra.mxu0 0.0
    %692 = vmatprep.subr.mxu0 0.0
    %693 = vmatpush1.msra.mxu0 0.0
    %694 = vmatprep.subr.mxu0 0.0
    %695 = vmatpush1.msra.mxu0 0.0
    %696 = vmatprep.subr.mxu0 0.0
    %697 = vmatpush1.msra.mxu0 0.0
    %698 = vmatprep.subr.mxu0 0.0
    %699 = vmatpush1.msra.mxu0 0.0
    %700 = vmatprep.subr.mxu0 0.0
    %701 = vmatpush1.msra.mxu0 0.0
    %702 = vmatprep.subr.mxu0 0.0
    %703 = vmatpush1.msra.mxu0 0.0
    %704 = vmatprep.mubr.f32.mxu0 0.0
    %705 = vmatmul.mubr.f32.gmra.mrb[0].mxu0 %v638
    %v706 = vpop.f32.mrb[0].mxu0
    %v707 = vadd.f32 %v635, %v706
    %v708 = vpop.f32.mrb[0].mxu0
    %709 = vdwg.mxu0
    %v710 = vld [vmem:[#allocation23] sm:$0x1]
    %v711 = vld [vmem:[#allocation25] sm:$0x1]
    %v712 = vsel %vm283, %v707, 0.0
    %713 = vadd.xlane.f32.xlu0 %v712
    %v714 = vpop.xlane.xlu0 %713
    %v715 = vmul.f32 %v707, %v707
    %v716 = vsel %vm283, %v715, 0.0
    %717 = vadd.xlane.f32.xlu0 %v716
    %v718 = vpop.xlane.xlu0 %717
    %v719 = vmul.f32 %v714, 0.03125
    %v720 = vmul.f32 %v718, 0.03125
    %v721 = vmul.f32 %v719, %v719
    %v722 = vsub.f32 %v720, %v721
    %v723 = vmax.f32 %v722, 0.0
    %v724 = vadd.f32 %v723, 1e-05
    %v725 = vrsqrt.pop %v724
    %v726 = vsub.f32 %v707, %v719
    %v728 = vlaneseq
    %v729 = vshrl.u32 %v728, 7
    %v730 = vsub.s32 0, %v729
    %v731 = vrot.slane %v710, %v730
    %v733 = vmul.f32 %v725, %v731
    %v734 = vmul.f32 %v726, %v733
    %v736 = vlaneseq
    %v737 = vshrl.u32 %v736, 7
    %v738 = vsub.s32 0, %v737
    %v739 = vrot.slane %v711, %v738
    %v741 = vadd.f32 %v734, %v739
    %v742 = vmax.f32 %v741, 0.0
    %v743 = vld [vmem:[%s18] sm:$0xff]
    %v744 = vld [vmem:[%s18 + $0x8] sm:$0xff]
    %v745 = vld [vmem:[%s18 + $0x10] sm:$0xff]
    %v746 = vld [vmem:[%s18 + $0x18] sm:$0xff]
    %v747 = vld [vmem:[%s19] sm:$0x1]
    %v749 = vlaneseq
    %v750 = vshrl.u32 %v749, 7
    %v751 = vsub.s32 0, %v750
    %v752 = vrot.slane %v747, %v751
    %v755 = vsel %vm283, %v742, 0
    %757 = vmatprep.subr.mxu0 0.0
    %758 = vmatpush1.msra.mxu0 %v743
    %759 = vmatprep.subr.mxu0 0.0
    %760 = vmatpush1.msra.mxu0 %v744
    %761 = vmatprep.subr.mxu0 0.0
    %762 = vmatpush1.msra.mxu0 %v745
    %763 = vmatprep.subr.mxu0 0.0
    %764 = vmatpush1.msra.mxu0 %v746
    %765 = vmatprep.subr.mxu0 0.0
    %766 = vmatpush1.msra.mxu0 0.0
    %767 = vmatprep.subr.mxu0 0.0
    %768 = vmatpush1.msra.mxu0 0.0
    %769 = vmatprep.subr.mxu0 0.0
    %770 = vmatpush1.msra.mxu0 0.0
    %771 = vmatprep.subr.mxu0 0.0
    %772 = vmatpush1.msra.mxu0 0.0
    %773 = vmatprep.subr.mxu0 0.0
    %774 = vmatpush1.msra.mxu0 0.0
    %775 = vmatprep.subr.mxu0 0.0
    %776 = vmatpush1.msra.mxu0 0.0
    %777 = vmatprep.subr.mxu0 0.0
    %778 = vmatpush1.msra.mxu0 0.0
    %779 = vmatprep.subr.mxu0 0.0
    %780 = vmatpush1.msra.mxu0 0.0
    %781 = vmatprep.subr.mxu0 0.0
    %782 = vmatpush1.msra.mxu0 0.0
    %783 = vmatprep.subr.mxu0 0.0
    %784 = vmatpush1.msra.mxu0 0.0
    %785 = vmatprep.subr.mxu0 0.0
    %786 = vmatpush1.msra.mxu0 0.0
    %787 = vmatprep.subr.mxu0 0.0
    %788 = vmatpush1.msra.mxu0 0.0
    %789 = vmatprep.subr.mxu0 0.0
    %790 = vmatpush1.msra.mxu0 0.0
    %791 = vmatprep.subr.mxu0 0.0
    %792 = vmatpush1.msra.mxu0 0.0
    %793 = vmatprep.subr.mxu0 0.0
    %794 = vmatpush1.msra.mxu0 0.0
    %795 = vmatprep.subr.mxu0 0.0
    %796 = vmatpush1.msra.mxu0 0.0
    %797 = vmatprep.subr.mxu0 0.0
    %798 = vmatpush1.msra.mxu0 0.0
    %799 = vmatprep.subr.mxu0 0.0
    %800 = vmatpush1.msra.mxu0 0.0
    %801 = vmatprep.subr.mxu0 0.0
    %802 = vmatpush1.msra.mxu0 0.0
    %803 = vmatprep.subr.mxu0 0.0
    %804 = vmatpush1.msra.mxu0 0.0
    %805 = vmatprep.subr.mxu0 0.0
    %806 = vmatpush1.msra.mxu0 0.0
    %807 = vmatprep.subr.mxu0 0.0
    %808 = vmatpush1.msra.mxu0 0.0
    %809 = vmatprep.subr.mxu0 0.0
    %810 = vmatpush1.msra.mxu0 0.0
    %811 = vmatprep.subr.mxu0 0.0
    %812 = vmatpush1.msra.mxu0 0.0
    %813 = vmatprep.subr.mxu0 0.0
    %814 = vmatpush1.msra.mxu0 0.0
    %815 = vmatprep.subr.mxu0 0.0
    %816 = vmatpush1.msra.mxu0 0.0
    %817 = vmatprep.subr.mxu0 0.0
    %818 = vmatpush1.msra.mxu0 0.0
    %819 = vmatprep.subr.mxu0 0.0
    %820 = vmatpush1.msra.mxu0 0.0
    %821 = vmatprep.mubr.f32.mxu0 0.0
    %822 = vmatmul.mubr.f32.gmra.mrb[0].mxu0 %v755
    %v823 = vpop.f32.mrb[0].mxu0
    %v824 = vadd.f32 %v752, %v823
    %v825 = vpop.f32.mrb[0].mxu0
    %826 = vdwg.mxu0
    %vm827 = vcmask 130048
    %828 = vst.msk [vmem:[#allocation26] sm:$0xff] %vm827, %v824
    // Predicated region
    $region142: #{tpu_custom_call.1} parent=1 // pred_check
      _
    $region143: #{tpu_custom_call.1} parent=1 // pred_check_branch
      %830 = sbr.rel (0) target = $region145
    $region144: #{tpu_custom_call.1} parent=1 // pred_region
      %s832 = ssub.s32 128, 128
      %833 = vsyncadd [#allocation4], %s832
      %s835 = sshll.u32 [#allocation26], 4
      %s836 = int_to_ptr.vmem [resolvable:$true] %s835
      %838 = dma.vmem_to_hbm [thread:$0]  %s836, 128, %s20, [#allocation4]
    $region145: #{tpu_custom_call.1} parent=1 // pred_fallthru
      _
    // Predicated region
    $region146: #{tpu_custom_call.1} parent=1 // pred_check
      _
    $region147: #{tpu_custom_call.1} parent=1 // pred_check_branch
      %840 = sbr.rel (0) target = $region149
    $region148: #{tpu_custom_call.1} parent=1 // pred_region
      %841 = dma.done [#allocation4], 128
    $region149: #{tpu_custom_call.1} parent=1 // pred_fallthru
      _
    %842 = vsyncpa [#allocation3], 1
    %843 = vsyncpa [#allocation6], 1
    %844 = vsyncpa [#allocation9], 1
    %845 = vsyncpa [#allocation12], 1
    %846 = vsyncpa [#allocation15], 1
    %847 = vsyncpa [#allocation18], 1
    %848 = vsyncpa [#allocation21], 1
    %849 = vsyncpa [#allocation24], 1
    %850 = vsyncpa [#allocation4], 1

// kernel: tpu_custom_call.1
$region0: #{tpu_custom_call.1}
  #allocation0 [shape = 'u32[]', space=smem, size = 0x4, offset = 0x4, fixed_abs, tag = 'smem constant byte address 0x4 - core index']
  #allocation1 [shape = 'u32[144,128]{1,0:T(1,128)}', space=vmem, size = 0x12000, scoped, tag = 'internal scratch']
  %s0 = inlined_call_operand.hbm [shape: f32[8,35], index: 0, kind: input, shape index: {}]
  %s1 = inlined_call_operand.hbm [shape: f32[3,32], index: 1, kind: input, shape index: {}]
  %s2 = inlined_call_operand.hbm [shape: f32[1,32], index: 2, kind: input, shape index: {}]
  %s3 = inlined_call_operand.hbm [shape: f32[1,32], index: 3, kind: input, shape index: {}]
  %s4 = inlined_call_operand.hbm [shape: f32[1,32], index: 4, kind: input, shape index: {}]
  %s5 = inlined_call_operand.vmem [shape: f32[32,32], index: 5, kind: input, shape index: {}]
  %s6 = inlined_call_operand.hbm [shape: f32[1,32], index: 6, kind: input, shape index: {}]
  %s7 = inlined_call_operand.hbm [shape: f32[1,32], index: 7, kind: input, shape index: {}]
  %s8 = inlined_call_operand.hbm [shape: f32[1,32], index: 8, kind: input, shape index: {}]
  %s9 = inlined_call_operand.vmem [shape: f32[32,32], index: 9, kind: input, shape index: {}]
  %s10 = inlined_call_operand.hbm [shape: f32[32,32], index: 10, kind: input, shape index: {}]
  %s11 = inlined_call_operand.hbm [shape: f32[1,32], index: 11, kind: input, shape index: {}]
  %s12 = inlined_call_operand.hbm [shape: f32[1,32], index: 12, kind: input, shape index: {}]
  %s13 = inlined_call_operand.hbm [shape: f32[1,32], index: 13, kind: input, shape index: {}]
  %s14 = inlined_call_operand.vmem [shape: f32[32,32], index: 14, kind: input, shape index: {}]
  %s15 = inlined_call_operand.hbm [shape: f32[1,32], index: 15, kind: input, shape index: {}]
  %s16 = inlined_call_operand.hbm [shape: f32[1,32], index: 16, kind: input, shape index: {}]
  %s17 = inlined_call_operand.hbm [shape: f32[1,32], index: 17, kind: input, shape index: {}]
  %s18 = inlined_call_operand.vmem [shape: f32[32,16], index: 18, kind: input, shape index: {}]
  %s19 = inlined_call_operand.vmem [shape: f32[1,16], index: 19, kind: input, shape index: {}]
  %s20 = inlined_call_operand.hbm [shape: f32[8,16], index: 20, kind: output, shape index: {}]
  %s21 = sld [smem:[#allocation0]]
  $region150: #{tpu_custom_call.1} parent=0
    _
  %s23 = ssub.s32 1, %s21
  %s24 = scalar_select 0, %s23, %s21
  $region1: #{tpu_custom_call.1} parent=0
    #allocation2 [shape = 'u8[4096]{0}', space=vmem, size = 0x1000, scoped, tag = 'input window, operand 0, single buffered']
    #allocation3 [shape = 's32[1]{0}', space=sflag, size = 0x4, scoped, tag = 'scoped memory for tpu_custom_call.1']
    #allocation4 [shape = 's32[1]{0}', space=sflag, size = 0x4, scoped, tag = 'scoped memory for tpu_custom_call.1']
    #allocation5 [shape = 'u8[2048]{0}', space=vmem, size = 0x800, scoped, tag = 'input window, operand 1, single buffered']
    #allocation6 [shape = 's32[1]{0}', space=sflag, size = 0x4, scoped, tag = 'scoped memory for tpu_custom_call.1']
    #allocation7 [shape = 'u8[512]{0}', space=vmem, size = 0x400, scoped, tag = 'input window, operand 2, single buffered']
    #allocation8 [shape = 'u8[512]{0}', space=vmem, size = 0x400, scoped, tag = 'input window, operand 3, single buffered']
    #allocation9 [shape = 's32[1]{0}', space=sflag, size = 0x4, scoped, tag = 'scoped memory for tpu_custom_call.1']
    #allocation10 [shape = 'u8[512]{0}', space=vmem, size = 0x400, scoped, tag = 'input window, operand 4, single buffered']
    #allocation11 [shape = 'u8[512]{0}', space=vmem, size = 0x400, scoped, tag = 'input window, operand 6, single buffered']
    #allocation12 [shape = 's32[1]{0}', space=sflag, size = 0x4, scoped, tag = 'scoped memory for tpu_custom_call.1']
    #allocation13 [shape = 'u8[512]{0}', space=vmem, size = 0x400, scoped, tag = 'input window, operand 7, single buffered']
    #allocation14 [shape = 'u8[512]{0}', space=vmem, size = 0x400, scoped, tag = 'input window, operand 8, single buffered']
    #allocation15 [shape = 's32[1]{0}', space=sflag, size = 0x4, scoped, tag = 'scoped memory for tpu_custom_call.1']
    #allocation16 [shape = 'u8[16384]{0}', space=vmem, size = 0x4000, scoped, tag = 'input window, operand 10, single buffered']
    #allocation17 [shape = 'u8[512]{0}', space=vmem, size = 0x400, scoped, tag = 'input window, operand 11, single buffered']
    #allocation18 [shape = 's32[1]{0}', space=sflag, size = 0x4, scoped, tag = 'scoped memory for tpu_custom_call.1']
    #allocation19 [shape = 'u8[512]{0}', space=vmem, size = 0x400, scoped, tag = 'input window, operand 12, single buffered']
    #allocation20 [shape = 'u8[512]{0}', space=vmem, size = 0x400, scoped, tag = 'input window, operand 13, single buffered']
    #allocation21 [shape = 's32[1]{0}', space=sflag, size = 0x4, scoped, tag = 'scoped memory for tpu_custom_call.1']
    #allocation22 [shape = 'u8[512]{0}', space=vmem, size = 0x400, scoped, tag = 'input window, operand 15, single buffered']
    #allocation23 [shape = 'u8[512]{0}', space=vmem, size = 0x400, scoped, tag = 'input window, operand 16, single buffered']
    #allocation24 [shape = 's32[1]{0}', space=sflag, size = 0x4, scoped, tag = 'scoped memory for tpu_custom_call.1']
    #allocation25 [shape = 'u8[512]{0}', space=vmem, size = 0x400, scoped, tag = 'input window, operand 17, single buffered']
    #allocation26 [shape = 'u8[4096]{0}', space=vmem, size = 0x1000, scoped, tag = 'output window, operand 0, single buffered']
    %25 = vsyncpa [#allocation3], 0
    %26 = vsyncpa [#allocation6], 0
    %27 = vsyncpa [#allocation9], 0
    %28 = vsyncpa [#allocation12], 0
    %29 = vsyncpa [#allocation15], 0
    %30 = vsyncpa [#allocation18], 0
    %31 = vsyncpa [#allocation21], 0
    %32 = vsyncpa [#allocation24], 0
    %33 = vsyncpa [#allocation4], 0
    // Predicated region
    $region2: #{tpu_custom_call.1} parent=1 // pred_check
      _
    $region3: #{tpu_custom_call.1} parent=1 // pred_check_branch
      %35 = sbr.rel (0) target = $region5
    $region4: #{tpu_custom_call.1} parent=1 // pred_region
      %s37 = ssub.s32 128, 128
      %38 = vsyncadd [#allocation3], %s37
      %s40 = sshll.u32 [#allocation2], 4
      %s41 = int_to_ptr.vmem [resolvable:$true] %s40
      %43 = dma.hbm_to_vmem [thread:$0]  %s0, 128, %s41, [#allocation3]
    $region5: #{tpu_custom_call.1} parent=1 // pred_fallthru
      _
    // Predicated region
    $region6: #{tpu_custom_call.1} parent=1 // pred_check
      _
    $region7: #{tpu_custom_call.1} parent=1 // pred_check_branch
      %45 = sbr.rel (0) target = $region9
    $region8: #{tpu_custom_call.1} parent=1 // pred_region
      %s47 = ssub.s32 64, 64
      %48 = vsyncadd [#allocation6], %s47
      %s50 = sshll.u32 [#allocation5], 4
      %s51 = int_to_ptr.vmem [resolvable:$true] %s50
      %53 = dma.hbm_to_vmem [thread:$0]  %s1, 64, %s51, [#allocation6]
    $region9: #{tpu_custom_call.1} parent=1 // pred_fallthru
      _
    // Predicated region
    $region10: #{tpu_custom_call.1} parent=1 // pred_check
      _
    $region11: #{tpu_custom_call.1} parent=1 // pred_check_branch
      %55 = sbr.rel (0) target = $region13
    $region12: #{tpu_custom_call.1} parent=1 // pred_region
      %s57 = ssub.s32 16, 16
      %58 = vsyncadd [#allocation6], %s57
      %s60 = sshll.u32 [#allocation7], 4
      %s61 = int_to_ptr.vmem [resolvable:$true] %s60
      %63 = dma.hbm_to_vmem [thread:$0]  %s2, 16, %s61, [#allocation6]
    $region13: #{tpu_custom_call.1} parent=1 // pred_fallthru
      _
    // Predicated region
    $region14: #{tpu_custom_call.1} parent=1 // pred_check
      _
    $region15: #{tpu_custom_call.1} parent=1 // pred_check_branch
      %65 = sbr.rel (0) target = $region17
    $region16: #{tpu_custom_call.1} parent=1 // pred_region
      %s67 = ssub.s32 16, 16
      %68 = vsyncadd [#allocation9], %s67
      %s70 = sshll.u32 [#allocation8], 4
      %s71 = int_to_ptr.vmem [resolvable:$true] %s70
      %73 = dma.hbm_to_vmem [thread:$0]  %s3, 16, %s71, [#allocation9]
    $region17: #{tpu_custom_call.1} parent=1 // pred_fallthru
      _
    // Predicated region
    $region18: #{tpu_custom_call.1} parent=1 // pred_check
      _
    $region19: #{tpu_custom_call.1} parent=1 // pred_check_branch
      %75 = sbr.rel (0) target = $region21
    $region20: #{tpu_custom_call.1} parent=1 // pred_region
      %s77 = ssub.s32 16, 16
      %78 = vsyncadd [#allocation9], %s77
      %s80 = sshll.u32 [#allocation10], 4
      %s81 = int_to_ptr.vmem [resolvable:$true] %s80
      %83 = dma.hbm_to_vmem [thread:$0]  %s4, 16, %s81, [#allocation9]
    $region21: #{tpu_custom_call.1} parent=1 // pred_fallthru
      _
    // Predicated region
    $region22: #{tpu_custom_call.1} parent=1 // pred_check
      _
    $region23: #{tpu_custom_call.1} parent=1 // pred_check_branch
      %85 = sbr.rel (0) target = $region25
    $region24: #{tpu_custom_call.1} parent=1 // pred_region
      _
    $region25: #{tpu_custom_call.1} parent=1 // pred_fallthru
      _
    // Predicated region
    $region26: #{tpu_custom_call.1} parent=1 // pred_check
      _
    $region27: #{tpu_custom_call.1} parent=1 // pred_check_branch
      %87 = sbr.rel (0) target = $region29
    $region28: #{tpu_custom_call.1} parent=1 // pred_region
      %s89 = ssub.s32 16, 16
      %90 = vsyncadd [#allocation12], %s89
      %s92 = sshll.u32 [#allocation11], 4
      %s93 = int_to_ptr.vmem [resolvable:$true] %s92
      %95 = dma.hbm_to_vmem [thread:$0]  %s6, 16, %s93, [#allocation12]
    $region29: #{tpu_custom_call.1} parent=1 // pred_fallthru
      _
    // Predicated region
    $region30: #{tpu_custom_call.1} parent=1 // pred_check
      _
    $region31: #{tpu_custom_call.1} parent=1 // pred_check_branch
      %97 = sbr.rel (0) target = $region33
    $region32: #{tpu_custom_call.1} parent=1 // pred_region
      %s99 = ssub.s32 16, 16
      %100 = vsyncadd [#allocation12], %s99
      %s102 = sshll.u32 [#allocation13], 4
      %s103 = int_to_ptr.vmem [resolvable:$true] %s102
      %105 = dma.hbm_to_vmem [thread:$0]  %s7, 16, %s103, [#allocation12]
    $region33: #{tpu_custom_call.1} parent=1 // pred_fallthru
      _
    // Predicated region
    $region34: #{tpu_custom_call.1} parent=1 // pred_check
      _
    $region35: #{tpu_custom_call.1} parent=1 // pred_check_branch
      %107 = sbr.rel (0) target = $region37
    $region36: #{tpu_custom_call.1} parent=1 // pred_region
      %s109 = ssub.s32 16, 16
      %110 = vsyncadd [#allocation15], %s109
      %s112 = sshll.u32 [#allocation14], 4
      %s113 = int_to_ptr.vmem [resolvable:$true] %s112
      %115 = dma.hbm_to_vmem [thread:$0]  %s8, 16, %s113, [#allocation15]
    $region37: #{tpu_custom_call.1} parent=1 // pred_fallthru
      _
    // Predicated region
    $region38: #{tpu_custom_call.1} parent=1 // pred_check
      _
    $region39: #{tpu_custom_call.1} parent=1 // pred_check_branch
      %117 = sbr.rel (0) target = $region41
    $region40: #{tpu_custom_call.1} parent=1 // pred_region
      _
    $region41: #{tpu_custom_call.1} parent=1 // pred_fallthru
      _
    // Predicated region
    $region42: #{tpu_custom_call.1} parent=1 // pred_check
      _
    $region43: #{tpu_custom_call.1} parent=1 // pred_check_branch
      %119 = sbr.rel (0) target = $region45
    $region44: #{tpu_custom_call.1} parent=1 // pred_region
      %s121 = ssub.s32 512, 512
      %122 = vsyncadd [#allocation15], %s121
      %s123 = sshll.u32 [#allocation16], 4
      %s124 = int_to_ptr.vmem [resolvable:$true] %s123
      %129 = dma.hbm_to_vmem [thread:$0]  %s10, 512, %s124, [#allocation15], 128, 128, 8
    $region45: #{tpu_custom_call.1} parent=1 // pred_fallthru
      _
    // Predicated region
    $region46: #{tpu_custom_call.1} parent=1 // pred_check
      _
    $region47: #{tpu_custom_call.1} parent=1 // pred_check_branch
      %131 = sbr.rel (0) target = $region49
    $region48: #{tpu_custom_call.1} parent=1 // pred_region
      %s133 = ssub.s32 16, 16
      %134 = vsyncadd [#allocation18], %s133
      %s136 = sshll.u32 [#allocation17], 4
      %s137 = int_to_ptr.vmem [resolvable:$true] %s136
      %139 = dma.hbm_to_vmem [thread:$0]  %s11, 16, %s137, [#allocation18]
    $region49: #{tpu_custom_call.1} parent=1 // pred_fallthru
      _
    // Predicated region
    $region50: #{tpu_custom_call.1} parent=1 // pred_check
      _
    $region51: #{tpu_custom_call.1} parent=1 // pred_check_branch
      %141 = sbr.rel (0) target = $region53
    $region52: #{tpu_custom_call.1} parent=1 // pred_region
      %s143 = ssub.s32 16, 16
      %144 = vsyncadd [#allocation18], %s143
      %s146 = sshll.u32 [#allocation19], 4
      %s147 = int_to_ptr.vmem [resolvable:$true] %s146
      %149 = dma.hbm_to_vmem [thread:$0]  %s12, 16, %s147, [#allocation18]
    $region53: #{tpu_custom_call.1} parent=1 // pred_fallthru
      _
    // Predicated region
    $region54: #{tpu_custom_call.1} parent=1 // pred_check
      _
    $region55: #{tpu_custom_call.1} parent=1 // pred_check_branch
      %151 = sbr.rel (0) target = $region57
    $region56: #{tpu_custom_call.1} parent=1 // pred_region
      %s153 = ssub.s32 16, 16
      %154 = vsyncadd [#allocation21], %s153
      %s156 = sshll.u32 [#allocation20], 4
      %s157 = int_to_ptr.vmem [resolvable:$true] %s156
      %159 = dma.hbm_to_vmem [thread:$0]  %s13, 16, %s157, [#allocation21]
    $region57: #{tpu_custom_call.1} parent=1 // pred_fallthru
      _
    // Predicated region
    $region58: #{tpu_custom_call.1} parent=1 // pred_check
      _
    $region59: #{tpu_custom_call.1} parent=1 // pred_check_branch
      %161 = sbr.rel (0) target = $region61
    $region60: #{tpu_custom_call.1} parent=1 // pred_region
      _
    $region61: #{tpu_custom_call.1} parent=1 // pred_fallthru
      _
    // Predicated region
    $region62: #{tpu_custom_call.1} parent=1 // pred_check
      _
    $region63: #{tpu_custom_call.1} parent=1 // pred_check_branch
      %163 = sbr.rel (0) target = $region65
    $region64: #{tpu_custom_call.1} parent=1 // pred_region
      %s165 = ssub.s32 16, 16
      %166 = vsyncadd [#allocation21], %s165
      %s168 = sshll.u32 [#allocation22], 4
      %s169 = int_to_ptr.vmem [resolvable:$true] %s168
      %171 = dma.hbm_to_vmem [thread:$0]  %s15, 16, %s169, [#allocation21]
    $region65: #{tpu_custom_call.1} parent=1 // pred_fallthru
      _
    // Predicated region
    $region66: #{tpu_custom_call.1} parent=1 // pred_check
      _
    $region67: #{tpu_custom_call.1} parent=1 // pred_check_branch
      %173 = sbr.rel (0) target = $region69
    $region68: #{tpu_custom_call.1} parent=1 // pred_region
      %s175 = ssub.s32 16, 16
      %176 = vsyncadd [#allocation24], %s175
      %s178 = sshll.u32 [#allocation23], 4
      %s179 = int_to_ptr.vmem [resolvable:$true] %s178
      %181 = dma.hbm_to_vmem [thread:$0]  %s16, 16, %s179, [#allocation24]
    $region69: #{tpu_custom_call.1} parent=1 // pred_fallthru
      _
    // Predicated region
    $region70: #{tpu_custom_call.1} parent=1 // pred_check
      _
    $region71: #{tpu_custom_call.1} parent=1 // pred_check_branch
      %183 = sbr.rel (0) target = $region73
    $region72: #{tpu_custom_call.1} parent=1 // pred_region
      %s185 = ssub.s32 16, 16
      %186 = vsyncadd [#allocation24], %s185
      %s188 = sshll.u32 [#allocation25], 4
      %s189 = int_to_ptr.vmem [resolvable:$true] %s188
      %191 = dma.hbm_to_vmem [thread:$0]  %s17, 16, %s189, [#allocation24]
    $region73: #{tpu_custom_call.1} parent=1 // pred_fallthru
      _
    // Predicated region
    $region74: #{tpu_custom_call.1} parent=1 // pred_check
      _
    $region75: #{tpu_custom_call.1} parent=1 // pred_check_branch
      %193 = sbr.rel (0) target = $region77
    $region76: #{tpu_custom_call.1} parent=1 // pred_region
      _
    $region77: #{tpu_custom_call.1} parent=1 // pred_fallthru
      _
    // Predicated region
    $region78: #{tpu_custom_call.1} parent=1 // pred_check
      _
    $region79: #{tpu_custom_call.1} parent=1 // pred_check_branch
      %195 = sbr.rel (0) target = $region81
    $region80: #{tpu_custom_call.1} parent=1 // pred_region
      _
    $region81: #{tpu_custom_call.1} parent=1 // pred_fallthru
      _
    // Predicated region
    $region82: #{tpu_custom_call.1} parent=1 // pred_check
      _
    $region83: #{tpu_custom_call.1} parent=1 // pred_check_branch
      %197 = sbr.rel (0) target = $region85
    $region84: #{tpu_custom_call.1} parent=1 // pred_region
      %198 = dma.done [#allocation3], 128
    $region85: #{tpu_custom_call.1} parent=1 // pred_fallthru
      _
    // Predicated region
    $region86: #{tpu_custom_call.1} parent=1 // pred_check
      _
    $region87: #{tpu_custom_call.1} parent=1 // pred_check_branch
      %200 = sbr.rel (0) target = $region89
    $region88: #{tpu_custom_call.1} parent=1 // pred_region
      %201 = dma.done [#allocation6], 64
    $region89: #{tpu_custom_call.1} parent=1 // pred_fallthru
      _
    // Predicated region
    $region90: #{tpu_custom_call.1} parent=1 // pred_check
      _
    $region91: #{tpu_custom_call.1} parent=1 // pred_check_branch
      %203 = sbr.rel (0) target = $region93
    $region92: #{tpu_custom_call.1} parent=1 // pred_region
      %204 = dma.done [#allocation6], 16
    $region93: #{tpu_custom_call.1} parent=1 // pred_fallthru
      _
    // Predicated region
    $region94: #{tpu_custom_call.1} parent=1 // pred_check
      _
    $region95: #{tpu_custom_call.1} parent=1 // pred_check_branch
      %206 = sbr.rel (0) target = $region97
    $region96: #{tpu_custom_call.1} parent=1 // pred_region
      %207 = dma.done [#allocation9], 16
    $region97: #{tpu_custom_call.1} parent=1 // pred_fallthru
      _
    // Predicated region
    $region98: #{tpu_custom_call.1} parent=1 // pred_check
      _
    $region99: #{tpu_custom_call.1} parent=1 // pred_check_branch
      %209 = sbr.rel (0) target = $region101
    $region100: #{tpu_custom_call.1} parent=1 // pred_region
      %210 = dma.done [#allocation9], 16
    $region101: #{tpu_custom_call.1} parent=1 // pred_fallthru
      _
    // Predicated region
    $region102: #{tpu_custom_call.1} parent=1 // pred_check
      _
    $region103: #{tpu_custom_call.1} parent=1 // pred_check_branch
      %212 = sbr.rel (0) target = $region105
    $region104: #{tpu_custom_call.1} parent=1 // pred_region
      %213 = dma.done [#allocation12], 16
    $region105: #{tpu_custom_call.1} parent=1 // pred_fallthru
      _
    // Predicated region
    $region106: #{tpu_custom_call.1} parent=1 // pred_check
      _
    $region107: #{tpu_custom_call.1} parent=1 // pred_check_branch
      %215 = sbr.rel (0) target = $region109
    $region108: #{tpu_custom_call.1} parent=1 // pred_region
      %216 = dma.done [#allocation12], 16
    $region109: #{tpu_custom_call.1} parent=1 // pred_fallthru
      _
    // Predicated region
    $region110: #{tpu_custom_call.1} parent=1 // pred_check
      _
    $region111: #{tpu_custom_call.1} parent=1 // pred_check_branch
      %218 = sbr.rel (0) target = $region113
    $region112: #{tpu_custom_call.1} parent=1 // pred_region
      %219 = dma.done [#allocation15], 16
    $region113: #{tpu_custom_call.1} parent=1 // pred_fallthru
      _
    // Predicated region
    $region114: #{tpu_custom_call.1} parent=1 // pred_check
      _
    $region115: #{tpu_custom_call.1} parent=1 // pred_check_branch
      %221 = sbr.rel (0) target = $region117
    $region116: #{tpu_custom_call.1} parent=1 // pred_region
      %222 = dma.done [#allocation15], 512
    $region117: #{tpu_custom_call.1} parent=1 // pred_fallthru
      _
    // Predicated region
    $region118: #{tpu_custom_call.1} parent=1 // pred_check
      _
    $region119: #{tpu_custom_call.1} parent=1 // pred_check_branch
      %224 = sbr.rel (0) target = $region121
    $region120: #{tpu_custom_call.1} parent=1 // pred_region
      %225 = dma.done [#allocation18], 16
    $region121: #{tpu_custom_call.1} parent=1 // pred_fallthru
      _
    // Predicated region
    $region122: #{tpu_custom_call.1} parent=1 // pred_check
      _
    $region123: #{tpu_custom_call.1} parent=1 // pred_check_branch
      %227 = sbr.rel (0) target = $region125
    $region124: #{tpu_custom_call.1} parent=1 // pred_region
      %228 = dma.done [#allocation18], 16
    $region125: #{tpu_custom_call.1} parent=1 // pred_fallthru
      _
    // Predicated region
    $region126: #{tpu_custom_call.1} parent=1 // pred_check
      _
    $region127: #{tpu_custom_call.1} parent=1 // pred_check_branch
      %230 = sbr.rel (0) target = $region129
    $region128: #{tpu_custom_call.1} parent=1 // pred_region
      %231 = dma.done [#allocation21], 16
    $region129: #{tpu_custom_call.1} parent=1 // pred_fallthru
      _
    // Predicated region
    $region130: #{tpu_custom_call.1} parent=1 // pred_check
      _
    $region131: #{tpu_custom_call.1} parent=1 // pred_check_branch
      %233 = sbr.rel (0) target = $region133
    $region132: #{tpu_custom_call.1} parent=1 // pred_region
      %234 = dma.done [#allocation21], 16
    $region133: #{tpu_custom_call.1} parent=1 // pred_fallthru
      _
    // Predicated region
    $region134: #{tpu_custom_call.1} parent=1 // pred_check
      _
    $region135: #{tpu_custom_call.1} parent=1 // pred_check_branch
      %236 = sbr.rel (0) target = $region137
    $region136: #{tpu_custom_call.1} parent=1 // pred_region
      %237 = dma.done [#allocation24], 16
    $region137: #{tpu_custom_call.1} parent=1 // pred_fallthru
      _
    // Predicated region
    $region138: #{tpu_custom_call.1} parent=1 // pred_check
      _
    $region139: #{tpu_custom_call.1} parent=1 // pred_check_branch
      %239 = sbr.rel (0) target = $region141
    $region140: #{tpu_custom_call.1} parent=1 // pred_region
      %240 = dma.done [#allocation24], 16
    $region141: #{tpu_custom_call.1} parent=1 // pred_fallthru
      _
    %v241 = vld [vmem:[#allocation2] sm:$0xff]
    %v242 = vld [vmem:[#allocation5] sm:$0x7]
    %244 = vset.pattern.permute.xlu0 32
    %245 = vperm.xlu0 %244, %v241
    %v246 = vpop.permute.xlu0 %245
    %v248 = vlaneseq
    %v249 = vshrl.u32 %v248, 7
    %v250 = vsub.s32 0, %v249
    %v251 = vrot.slane %v242, %v250
    %v252 = vmul.f32 %v246, %v251
    %253 = vset.pattern.permute.xlu0 33
    %254 = vperm.xlu0 %253, %v241
    %v255 = vpop.permute.xlu0 %254
    %v257 = vlaneseq
    %v258 = vshrl.u32 %v257, 7
    %v259 = vsub.s32 1, %v258
    %v260 = vrot.slane %v242, %v259
    %v261 = vmul.f32 %v255, %v260
    %v262 = vadd.f32 %v252, %v261
    %263 = vset.pattern.permute.xlu0 34
    %264 = vperm.xlu0 %263, %v241
    %v265 = vpop.permute.xlu0 %264
    %v267 = vlaneseq
    %v268 = vshrl.u32 %v267, 7
    %v269 = vsub.s32 2, %v268
    %v270 = vrot.slane %v242, %v269
    %v271 = vmul.f32 %v265, %v270
    %v272 = vadd.f32 %v262, %v271
    %v273 = vld [vmem:[#allocation7] sm:$0x1]
    %v275 = vlaneseq
    %v276 = vshrl.u32 %v275, 7
    %v277 = vsub.s32 0, %v276
    %v278 = vrot.slane %v273, %v277
    %v280 = vadd.f32 %v272, %v278
    %v281 = vld [vmem:[#allocation8] sm:$0x1]
    %v282 = vld [vmem:[#allocation10] sm:$0x1]
    %vm283 = vcmask 261120
    %v284 = vsel %vm283, %v280, 0.0
    %285 = vadd.xlane.f32.xlu0 %v284
    %v286 = vpop.xlane.xlu0 %285
    %v287 = vmul.f32 %v280, %v280
    %v288 = vsel %vm283, %v287, 0.0
    %289 = vadd.xlane.f32.xlu0 %v288
    %v290 = vpop.xlane.xlu0 %289
    %v291 = vmul.f32 %v286, 0.03125
    %v292 = vmul.f32 %v290, 0.03125
    %v293 = vmul.f32 %v291, %v291
    %v294 = vsub.f32 %v292, %v293
    %v295 = vmax.f32 %v294, 0.0
    %v296 = vadd.f32 %v295, 1e-05
    %v297 = vrsqrt.pop %v296
    %v298 = vsub.f32 %v280, %v291
    %v300 = vlaneseq
    %v301 = vshrl.u32 %v300, 7
    %v302 = vsub.s32 0, %v301
    %v303 = vrot.slane %v281, %v302
    %v305 = vmul.f32 %v297, %v303
    %v306 = vmul.f32 %v298, %v305
    %v308 = vlaneseq
    %v309 = vshrl.u32 %v308, 7
    %v310 = vsub.s32 0, %v309
    %v311 = vrot.slane %v282, %v310
    %v313 = vadd.f32 %v306, %v311
    %v314 = vmax.f32 %v313, 0.0
    %v315 = vld [vmem:[%s5] sm:$0xff]
    %v316 = vld [vmem:[%s5 + $0x8] sm:$0xff]
    %v317 = vld [vmem:[%s5 + $0x10] sm:$0xff]
    %v318 = vld [vmem:[%s5 + $0x18] sm:$0xff]
    %v319 = vld [vmem:[#allocation11] sm:$0x1]
    %v321 = vlaneseq
    %v322 = vshrl.u32 %v321, 7
    %v323 = vsub.s32 0, %v322
    %v324 = vrot.slane %v319, %v323
    %v327 = vsel %vm283, %v314, 0
    %329 = vmatprep.subr.mxu0 0.0
    %330 = vmatpush1.msra.mxu0 %v315
    %331 = vmatprep.subr.mxu0 0.0
    %332 = vmatpush1.msra.mxu0 %v316
    %333 = vmatprep.subr.mxu0 0.0
    %334 = vmatpush1.msra.mxu0 %v317
    %335 = vmatprep.subr.mxu0 0.0
    %336 = vmatpush1.msra.mxu0 %v318
    %337 = vmatprep.subr.mxu0 0.0
    %338 = vmatpush1.msra.mxu0 0.0
    %339 = vmatprep.subr.mxu0 0.0
    %340 = vmatpush1.msra.mxu0 0.0
    %341 = vmatprep.subr.mxu0 0.0
    %342 = vmatpush1.msra.mxu0 0.0
    %343 = vmatprep.subr.mxu0 0.0
    %344 = vmatpush1.msra.mxu0 0.0
    %345 = vmatprep.subr.mxu0 0.0
    %346 = vmatpush1.msra.mxu0 0.0
    %347 = vmatprep.subr.mxu0 0.0
    %348 = vmatpush1.msra.mxu0 0.0
    %349 = vmatprep.subr.mxu0 0.0
    %350 = vmatpush1.msra.mxu0 0.0
    %351 = vmatprep.subr.mxu0 0.0
    %352 = vmatpush1.msra.mxu0 0.0
    %353 = vmatprep.subr.mxu0 0.0
    %354 = vmatpush1.msra.mxu0 0.0
    %355 = vmatprep.subr.mxu0 0.0
    %356 = vmatpush1.msra.mxu0 0.0
    %357 = vmatprep.subr.mxu0 0.0
    %358 = vmatpush1.msra.mxu0 0.0
    %359 = vmatprep.subr.mxu0 0.0
    %360 = vmatpush1.msra.mxu0 0.0
    %361 = vmatprep.subr.mxu0 0.0
    %362 = vmatpush1.msra.mxu0 0.0
    %363 = vmatprep.subr.mxu0 0.0
    %364 = vmatpush1.msra.mxu0 0.0
    %365 = vmatprep.subr.mxu0 0.0
    %366 = vmatpush1.msra.mxu0 0.0
    %367 = vmatprep.subr.mxu0 0.0
    %368 = vmatpush1.msra.mxu0 0.0
    %369 = vmatprep.subr.mxu0 0.0
    %370 = vmatpush1.msra.mxu0 0.0
    %371 = vmatprep.subr.mxu0 0.0
    %372 = vmatpush1.msra.mxu0 0.0
    %373 = vmatprep.subr.mxu0 0.0
    %374 = vmatpush1.msra.mxu0 0.0
    %375 = vmatprep.subr.mxu0 0.0
    %376 = vmatpush1.msra.mxu0 0.0
    %377 = vmatprep.subr.mxu0 0.0
    %378 = vmatpush1.msra.mxu0 0.0
    %379 = vmatprep.subr.mxu0 0.0
    %380 = vmatpush1.msra.mxu0 0.0
    %381 = vmatprep.subr.mxu0 0.0
    %382 = vmatpush1.msra.mxu0 0.0
    %383 = vmatprep.subr.mxu0 0.0
    %384 = vmatpush1.msra.mxu0 0.0
    %385 = vmatprep.subr.mxu0 0.0
    %386 = vmatpush1.msra.mxu0 0.0
    %387 = vmatprep.subr.mxu0 0.0
    %388 = vmatpush1.msra.mxu0 0.0
    %389 = vmatprep.subr.mxu0 0.0
    %390 = vmatpush1.msra.mxu0 0.0
    %391 = vmatprep.subr.mxu0 0.0
    %392 = vmatpush1.msra.mxu0 0.0
    %393 = vmatprep.mubr.f32.mxu0 0.0
    %394 = vmatmul.mubr.f32.gmra.mrb[0].mxu0 %v327
    %v395 = vpop.f32.mrb[0].mxu0
    %v396 = vadd.f32 %v324, %v395
    %v397 = vpop.f32.mrb[0].mxu0
    %398 = vdwg.mxu0
    %v399 = vld [vmem:[#allocation13] sm:$0x1]
    %v400 = vld [vmem:[#allocation14] sm:$0x1]
    %v401 = vsel %vm283, %v396, 0.0
    %402 = vadd.xlane.f32.xlu0 %v401
    %v403 = vpop.xlane.xlu0 %402
    %v404 = vmul.f32 %v396, %v396
    %v405 = vsel %vm283, %v404, 0.0
    %406 = vadd.xlane.f32.xlu0 %v405
    %v407 = vpop.xlane.xlu0 %406
    %v408 = vmul.f32 %v403, 0.03125
    %v409 = vmul.f32 %v407, 0.03125
    %v410 = vmul.f32 %v408, %v408
    %v411 = vsub.f32 %v409, %v410
    %v412 = vmax.f32 %v411, 0.0
    %v413 = vadd.f32 %v412, 1e-05
    %v414 = vrsqrt.pop %v413
    %v415 = vsub.f32 %v396, %v408
    %v417 = vlaneseq
    %v418 = vshrl.u32 %v417, 7
    %v419 = vsub.s32 0, %v418
    %v420 = vrot.slane %v399, %v419
    %v422 = vmul.f32 %v414, %v420
    %v423 = vmul.f32 %v415, %v422
    %v425 = vlaneseq
    %v426 = vshrl.u32 %v425, 7
    %v427 = vsub.s32 0, %v426
    %v428 = vrot.slane %v400, %v427
    %v430 = vadd.f32 %v423, %v428
    %v431 = vmax.f32 %v430, 0.0
    %v432 = vld [vmem:[%s9] sm:$0xff]
    %v433 = vld [vmem:[%s9 + $0x8] sm:$0xff]
    %v434 = vld [vmem:[%s9 + $0x10] sm:$0xff]
    %v435 = vld [vmem:[%s9 + $0x18] sm:$0xff]
    %v436 = vld [vmem:[#allocation16] sm:$0xff]
    %v437 = vld [vmem:[#allocation16 + $0x8] sm:$0xff]
    %v438 = vld [vmem:[#allocation16 + $0x10] sm:$0xff]
    %v439 = vld [vmem:[#allocation16 + $0x18] sm:$0xff]
    %v441 = vsel %vm283, %v431, 0
    %443 = vmatprep.subr.mxu0 0.0
    %444 = vmatpush1.msra.mxu0 %v436
    %445 = vmatprep.subr.mxu0 0.0
    %446 = vmatpush1.msra.mxu0 %v437
    %447 = vmatprep.subr.mxu0 0.0
    %448 = vmatpush1.msra.mxu0 %v438
    %449 = vmatprep.subr.mxu0 0.0
    %450 = vmatpush1.msra.mxu0 %v439
    %451 = vmatprep.subr.mxu0 0.0
    %452 = vmatpush1.msra.mxu0 0.0
    %453 = vmatprep.subr.mxu0 0.0
    %454 = vmatpush1.msra.mxu0 0.0
    %455 = vmatprep.subr.mxu0 0.0
    %456 = vmatpush1.msra.mxu0 0.0
    %457 = vmatprep.subr.mxu0 0.0
    %458 = vmatpush1.msra.mxu0 0.0
    %459 = vmatprep.subr.mxu0 0.0
    %460 = vmatpush1.msra.mxu0 0.0
    %461 = vmatprep.subr.mxu0 0.0
    %462 = vmatpush1.msra.mxu0 0.0
    %463 = vmatprep.subr.mxu0 0.0
    %464 = vmatpush1.msra.mxu0 0.0
    %465 = vmatprep.subr.mxu0 0.0
    %466 = vmatpush1.msra.mxu0 0.0
    %467 = vmatprep.subr.mxu0 0.0
    %468 = vmatpush1.msra.mxu0 0.0
    %469 = vmatprep.subr.mxu0 0.0
    %470 = vmatpush1.msra.mxu0 0.0
    %471 = vmatprep.subr.mxu0 0.0
    %472 = vmatpush1.msra.mxu0 0.0
    %473 = vmatprep.subr.mxu0 0.0
    %474 = vmatpush1.msra.mxu0 0.0
    %475 = vmatprep.subr.mxu0 0.0
    %476 = vmatpush1.msra.mxu0 0.0
    %477 = vmatprep.subr.mxu0 0.0
    %478 = vmatpush1.msra.mxu0 0.0
    %479 = vmatprep.subr.mxu0 0.0
    %480 = vmatpush1.msra.mxu0 0.0
    %481 = vmatprep.subr.mxu0 0.0
    %482 = vmatpush1.msra.mxu0 0.0
    %483 = vmatprep.subr.mxu0 0.0
    %484 = vmatpush1.msra.mxu0 0.0
    %485 = vmatprep.subr.mxu0 0.0
    %486 = vmatpush1.msra.mxu0 0.0
    %487 = vmatprep.subr.mxu0 0.0
    %488 = vmatpush1.msra.mxu0 0.0
    %489 = vmatprep.subr.mxu0 0.0
    %490 = vmatpush1.msra.mxu0 0.0
    %491 = vmatprep.subr.mxu0 0.0
    %492 = vmatpush1.msra.mxu0 0.0
    %493 = vmatprep.subr.mxu0 0.0
    %494 = vmatpush1.msra.mxu0 0.0
    %495 = vmatprep.subr.mxu0 0.0
    %496 = vmatpush1.msra.mxu0 0.0
    %497 = vmatprep.subr.mxu0 0.0
    %498 = vmatpush1.msra.mxu0 0.0
    %499 = vmatprep.subr.mxu0 0.0
    %500 = vmatpush1.msra.mxu0 0.0
    %501 = vmatprep.subr.mxu0 0.0
    %502 = vmatpush1.msra.mxu0 0.0
    %503 = vmatprep.subr.mxu0 0.0
    %504 = vmatpush1.msra.mxu0 0.0
    %505 = vmatprep.subr.mxu0 0.0
    %506 = vmatpush1.msra.mxu0 0.0
    %507 = vmatprep.mubr.f32.mxu0 0.0
    %508 = vmatmul.mubr.f32.gmra.mrb[0].mxu0 %v441
    %v509 = vpop.f32.mrb[0].mxu0
    %v510 = vadd.f32 0.0, %v509
    %v511 = vpop.f32.mrb[0].mxu0
    %512 = vdwg.mxu0
    %v513 = vsel %vm283, %v241, 0
    %515 = vmatprep.subr.mxu0 0.0
    %516 = vmatpush1.msra.mxu0 %v432
    %517 = vmatprep.subr.mxu0 0.0
    %518 = vmatpush1.msra.mxu0 %v433
    %519 = vmatprep.subr.mxu0 0.0
    %520 = vmatpush1.msra.mxu0 %v434
    %521 = vmatprep.subr.mxu0 0.0
    %522 = vmatpush1.msra.mxu0 %v435
    %523 = vmatprep.subr.mxu0 0.0
    %524 = vmatpush1.msra.mxu0 0.0
    %525 = vmatprep.subr.mxu0 0.0
    %526 = vmatpush1.msra.mxu0 0.0
    %527 = vmatprep.subr.mxu0 0.0
    %528 = vmatpush1.msra.mxu0 0.0
    %529 = vmatprep.subr.mxu0 0.0
    %530 = vmatpush1.msra.mxu0 0.0
    %531 = vmatprep.subr.mxu0 0.0
    %532 = vmatpush1.msra.mxu0 0.0
    %533 = vmatprep.subr.mxu0 0.0
    %534 = vmatpush1.msra.mxu0 0.0
    %535 = vmatprep.subr.mxu0 0.0
    %536 = vmatpush1.msra.mxu0 0.0
    %537 = vmatprep.subr.mxu0 0.0
    %538 = vmatpush1.msra.mxu0 0.0
    %539 = vmatprep.subr.mxu0 0.0
    %540 = vmatpush1.msra.mxu0 0.0
    %541 = vmatprep.subr.mxu0 0.0
    %542 = vmatpush1.msra.mxu0 0.0
    %543 = vmatprep.subr.mxu0 0.0
    %544 = vmatpush1.msra.mxu0 0.0
    %545 = vmatprep.subr.mxu0 0.0
    %546 = vmatpush1.msra.mxu0 0.0
    %547 = vmatprep.subr.mxu0 0.0
    %548 = vmatpush1.msra.mxu0 0.0
    %549 = vmatprep.subr.mxu0 0.0
    %550 = vmatpush1.msra.mxu0 0.0
    %551 = vmatprep.subr.mxu0 0.0
    %552 = vmatpush1.msra.mxu0 0.0
    %553 = vmatprep.subr.mxu0 0.0
    %554 = vmatpush1.msra.mxu0 0.0
    %555 = vmatprep.subr.mxu0 0.0
    %556 = vmatpush1.msra.mxu0 0.0
    %557 = vmatprep.subr.mxu0 0.0
    %558 = vmatpush1.msra.mxu0 0.0
    %559 = vmatprep.subr.mxu0 0.0
    %560 = vmatpush1.msra.mxu0 0.0
    %561 = vmatprep.subr.mxu0 0.0
    %562 = vmatpush1.msra.mxu0 0.0
    %563 = vmatprep.subr.mxu0 0.0
    %564 = vmatpush1.msra.mxu0 0.0
    %565 = vmatprep.subr.mxu0 0.0
    %566 = vmatpush1.msra.mxu0 0.0
    %567 = vmatprep.subr.mxu0 0.0
    %568 = vmatpush1.msra.mxu0 0.0
    %569 = vmatprep.subr.mxu0 0.0
    %570 = vmatpush1.msra.mxu0 0.0
    %571 = vmatprep.subr.mxu0 0.0
    %572 = vmatpush1.msra.mxu0 0.0
    %573 = vmatprep.subr.mxu0 0.0
    %574 = vmatpush1.msra.mxu0 0.0
    %575 = vmatprep.subr.mxu0 0.0
    %576 = vmatpush1.msra.mxu0 0.0
    %577 = vmatprep.subr.mxu0 0.0
    %578 = vmatpush1.msra.mxu0 0.0
    %579 = vmatprep.mubr.f32.mxu0 0.0
    %580 = vmatmul.mubr.f32.gmra.mrb[0].mxu0 %v513
    %v581 = vpop.f32.mrb[0].mxu0
    %v582 = vadd.f32 %v510, %v581
    %v583 = vpop.f32.mrb[0].mxu0
    %584 = vdwg.mxu0
    %v585 = vld [vmem:[#allocation17] sm:$0x1]
    %v587 = vlaneseq
    %v588 = vshrl.u32 %v587, 7
    %v589 = vsub.s32 0, %v588
    %v590 = vrot.slane %v585, %v589
    %v592 = vadd.f32 %v582, %v590
    %v593 = vld [vmem:[#allocation19] sm:$0x1]
    %v594 = vld [vmem:[#allocation20] sm:$0x1]
    %v595 = vsel %vm283, %v592, 0.0
    %596 = vadd.xlane.f32.xlu0 %v595
    %v597 = vpop.xlane.xlu0 %596
    %v598 = vmul.f32 %v592, %v592
    %v599 = vsel %vm283, %v598, 0.0
    %600 = vadd.xlane.f32.xlu0 %v599
    %v601 = vpop.xlane.xlu0 %600
    %v602 = vmul.f32 %v597, 0.03125
    %v603 = vmul.f32 %v601, 0.03125
    %v604 = vmul.f32 %v602, %v602
    %v605 = vsub.f32 %v603, %v604
    %v606 = vmax.f32 %v605, 0.0
    %v607 = vadd.f32 %v606, 1e-05
    %v608 = vrsqrt.pop %v607
    %v609 = vsub.f32 %v592, %v602
    %v611 = vlaneseq
    %v612 = vshrl.u32 %v611, 7
    %v613 = vsub.s32 0, %v612
    %v614 = vrot.slane %v593, %v613
    %v616 = vmul.f32 %v608, %v614
    %v617 = vmul.f32 %v609, %v616
    %v619 = vlaneseq
    %v620 = vshrl.u32 %v619, 7
    %v621 = vsub.s32 0, %v620
    %v622 = vrot.slane %v594, %v621
    %v624 = vadd.f32 %v617, %v622
    %v625 = vmax.f32 %v624, 0.0
    %v626 = vld [vmem:[%s14] sm:$0xff]
    %v627 = vld [vmem:[%s14 + $0x8] sm:$0xff]
    %v628 = vld [vmem:[%s14 + $0x10] sm:$0xff]
    %v629 = vld [vmem:[%s14 + $0x18] sm:$0xff]
    %v630 = vld [vmem:[#allocation22] sm:$0x1]
    %v632 = vlaneseq
    %v633 = vshrl.u32 %v632, 7
    %v634 = vsub.s32 0, %v633
    %v635 = vrot.slane %v630, %v634
    %v638 = vsel %vm283, %v625, 0
    %640 = vmatprep.subr.mxu0 0.0
    %641 = vmatpush1.msra.mxu0 %v626
    %642 = vmatprep.subr.mxu0 0.0
    %643 = vmatpush1.msra.mxu0 %v627
    %644 = vmatprep.subr.mxu0 0.0
    %645 = vmatpush1.msra.mxu0 %v628
    %646 = vmatprep.subr.mxu0 0.0
    %647 = vmatpush1.msra.mxu0 %v629
    %648 = vmatprep.subr.mxu0 0.0
    %649 = vmatpush1.msra.mxu0 0.0
    %650 = vmatprep.subr.mxu0 0.0
    %651 = vmatpush1.msra.mxu0 0.0
    %652 = vmatprep.subr.mxu0 0.0
    %653 = vmatpush1.msra.mxu0 0.0
    %654 = vmatprep.subr.mxu0 0.0
    %655 = vmatpush1.msra.mxu0 0.0
    %656 = vmatprep.subr.mxu0 0.0
    %657 = vmatpush1.msra.mxu0 0.0
    %658 = vmatprep.subr.mxu0 0.0
    %659 = vmatpush1.msra.mxu0 0.0
    %660 = vmatprep.subr.mxu0 0.0
    %661 = vmatpush1.msra.mxu0 0.0
    %662 = vmatprep.subr.mxu0 0.0
    %663 = vmatpush1.msra.mxu0 0.0
    %664 = vmatprep.subr.mxu0 0.0
    %665 = vmatpush1.msra.mxu0 0.0
    %666 = vmatprep.subr.mxu0 0.0
    %667 = vmatpush1.msra.mxu0 0.0
    %668 = vmatprep.subr.mxu0 0.0
    %669 = vmatpush1.msra.mxu0 0.0
    %670 = vmatprep.subr.mxu0 0.0
    %671 = vmatpush1.msra.mxu0 0.0
    %672 = vmatprep.subr.mxu0 0.0
    %673 = vmatpush1.msra.mxu0 0.0
    %674 = vmatprep.subr.mxu0 0.0
    %675 = vmatpush1.msra.mxu0 0.0
    %676 = vmatprep.subr.mxu0 0.0
    %677 = vmatpush1.msra.mxu0 0.0
    %678 = vmatprep.subr.mxu0 0.0
    %679 = vmatpush1.msra.mxu0 0.0
    %680 = vmatprep.subr.mxu0 0.0
    %681 = vmatpush1.msra.mxu0 0.0
    %682 = vmatprep.subr.mxu0 0.0
    %683 = vmatpush1.msra.mxu0 0.0
    %684 = vmatprep.subr.mxu0 0.0
    %685 = vmatpush1.msra.mxu0 0.0
    %686 = vmatprep.subr.mxu0 0.0
    %687 = vmatpush1.msra.mxu0 0.0
    %688 = vmatprep.subr.mxu0 0.0
    %689 = vmatpush1.msra.mxu0 0.0
    %690 = vmatprep.subr.mxu0 0.0
    %691 = vmatpush1.msra.mxu0 0.0
    %692 = vmatprep.subr.mxu0 0.0
    %693 = vmatpush1.msra.mxu0 0.0
    %694 = vmatprep.subr.mxu0 0.0
    %695 = vmatpush1.msra.mxu0 0.0
    %696 = vmatprep.subr.mxu0 0.0
    %697 = vmatpush1.msra.mxu0 0.0
    %698 = vmatprep.subr.mxu0 0.0
    %699 = vmatpush1.msra.mxu0 0.0
    %700 = vmatprep.subr.mxu0 0.0
    %701 = vmatpush1.msra.mxu0 0.0
    %702 = vmatprep.subr.mxu0 0.0
    %703 = vmatpush1.msra.mxu0 0.0
    %704 = vmatprep.mubr.f32.mxu0 0.0
    %705 = vmatmul.mubr.f32.gmra.mrb[0].mxu0 %v638
    %v706 = vpop.f32.mrb[0].mxu0
    %v707 = vadd.f32 %v635, %v706
    %v708 = vpop.f32.mrb[0].mxu0
    %709 = vdwg.mxu0
    %v710 = vld [vmem:[#allocation23] sm:$0x1]
    %v711 = vld [vmem:[#allocation25] sm:$0x1]
    %v712 = vsel %vm283, %v707, 0.0
    %713 = vadd.xlane.f32.xlu0 %v712
    %v714 = vpop.xlane.xlu0 %713
    %v715 = vmul.f32 %v707, %v707
    %v716 = vsel %vm283, %v715, 0.0
    %717 = vadd.xlane.f32.xlu0 %v716
    %v718 = vpop.xlane.xlu0 %717
    %v719 = vmul.f32 %v714, 0.03125
    %v720 = vmul.f32 %v718, 0.03125
    %v721 = vmul.f32 %v719, %v719
    %v722 = vsub.f32 %v720, %v721
    %v723 = vmax.f32 %v722, 0.0
    %v724 = vadd.f32 %v723, 1e-05
    %v725 = vrsqrt.pop %v724
    %v726 = vsub.f32 %v707, %v719
    %v728 = vlaneseq
    %v729 = vshrl.u32 %v728, 7
    %v730 = vsub.s32 0, %v729
    %v731 = vrot.slane %v710, %v730
    %v733 = vmul.f32 %v725, %v731
    %v734 = vmul.f32 %v726, %v733
    %v736 = vlaneseq
    %v737 = vshrl.u32 %v736, 7
    %v738 = vsub.s32 0, %v737
    %v739 = vrot.slane %v711, %v738
    %v741 = vadd.f32 %v734, %v739
    %v742 = vmax.f32 %v741, 0.0
    %v743 = vld [vmem:[%s18] sm:$0xff]
    %v744 = vld [vmem:[%s18 + $0x8] sm:$0xff]
    %v745 = vld [vmem:[%s18 + $0x10] sm:$0xff]
    %v746 = vld [vmem:[%s18 + $0x18] sm:$0xff]
    %v747 = vld [vmem:[%s19] sm:$0x1]
    %v749 = vlaneseq
    %v750 = vshrl.u32 %v749, 7
    %v751 = vsub.s32 0, %v750
    %v752 = vrot.slane %v747, %v751
    %v755 = vsel %vm283, %v742, 0
    %757 = vmatprep.subr.mxu0 0.0
    %758 = vmatpush1.msra.mxu0 %v743
    %759 = vmatprep.subr.mxu0 0.0
    %760 = vmatpush1.msra.mxu0 %v744
    %761 = vmatprep.subr.mxu0 0.0
    %762 = vmatpush1.msra.mxu0 %v745
    %763 = vmatprep.subr.mxu0 0.0
    %764 = vmatpush1.msra.mxu0 %v746
    %765 = vmatprep.subr.mxu0 0.0
    %766 = vmatpush1.msra.mxu0 0.0
    %767 = vmatprep.subr.mxu0 0.0
    %768 = vmatpush1.msra.mxu0 0.0
    %769 = vmatprep.subr.mxu0 0.0
    %770 = vmatpush1.msra.mxu0 0.0
    %771 = vmatprep.subr.mxu0 0.0
    %772 = vmatpush1.msra.mxu0 0.0
    %773 = vmatprep.subr.mxu0 0.0
    %774 = vmatpush1.msra.mxu0 0.0
    %775 = vmatprep.subr.mxu0 0.0
    %776 = vmatpush1.msra.mxu0 0.0
    %777 = vmatprep.subr.mxu0 0.0
    %778 = vmatpush1.msra.mxu0 0.0
    %779 = vmatprep.subr.mxu0 0.0
    %780 = vmatpush1.msra.mxu0 0.0
    %781 = vmatprep.subr.mxu0 0.0
    %782 = vmatpush1.msra.mxu0 0.0
    %783 = vmatprep.subr.mxu0 0.0
    %784 = vmatpush1.msra.mxu0 0.0
    %785 = vmatprep.subr.mxu0 0.0
    %786 = vmatpush1.msra.mxu0 0.0
    %787 = vmatprep.subr.mxu0 0.0
    %788 = vmatpush1.msra.mxu0 0.0
    %789 = vmatprep.subr.mxu0 0.0
    %790 = vmatpush1.msra.mxu0 0.0
    %791 = vmatprep.subr.mxu0 0.0
    %792 = vmatpush1.msra.mxu0 0.0
    %793 = vmatprep.subr.mxu0 0.0
    %794 = vmatpush1.msra.mxu0 0.0
    %795 = vmatprep.subr.mxu0 0.0
    %796 = vmatpush1.msra.mxu0 0.0
    %797 = vmatprep.subr.mxu0 0.0
    %798 = vmatpush1.msra.mxu0 0.0
    %799 = vmatprep.subr.mxu0 0.0
    %800 = vmatpush1.msra.mxu0 0.0
    %801 = vmatprep.subr.mxu0 0.0
    %802 = vmatpush1.msra.mxu0 0.0
    %803 = vmatprep.subr.mxu0 0.0
    %804 = vmatpush1.msra.mxu0 0.0
    %805 = vmatprep.subr.mxu0 0.0
    %806 = vmatpush1.msra.mxu0 0.0
    %807 = vmatprep.subr.mxu0 0.0
    %808 = vmatpush1.msra.mxu0 0.0
    %809 = vmatprep.subr.mxu0 0.0
    %810 = vmatpush1.msra.mxu0 0.0
    %811 = vmatprep.subr.mxu0 0.0
    %812 = vmatpush1.msra.mxu0 0.0
    %813 = vmatprep.subr.mxu0 0.0
    %814 = vmatpush1.msra.mxu0 0.0
    %815 = vmatprep.subr.mxu0 0.0
    %816 = vmatpush1.msra.mxu0 0.0
    %817 = vmatprep.subr.mxu0 0.0
    %818 = vmatpush1.msra.mxu0 0.0
    %819 = vmatprep.subr.mxu0 0.0
    %820 = vmatpush1.msra.mxu0 0.0
    %821 = vmatprep.mubr.f32.mxu0 0.0
    %822 = vmatmul.mubr.f32.gmra.mrb[0].mxu0 %v755
    %v823 = vpop.f32.mrb[0].mxu0
    %v824 = vadd.f32 %v752, %v823
    %v825 = vpop.f32.mrb[0].mxu0
    %826 = vdwg.mxu0
    %vm827 = vcmask 130048
    %828 = vst.msk [vmem:[#allocation26] sm:$0xff] %vm827, %v824
    // Predicated region
    $region142: #{tpu_custom_call.1} parent=1 // pred_check
      _
    $region143: #{tpu_custom_call.1} parent=1 // pred_check_branch
      %830 = sbr.rel (0) target = $region145
    $region144: #{tpu_custom_call.1} parent=1 // pred_region
      %s832 = ssub.s32 128, 128
      %833 = vsyncadd [#allocation4], %s832
      %s835 = sshll.u32 [#allocation26], 4
      %s836 = int_to_ptr.vmem [resolvable:$true] %s835
      %838 = dma.vmem_to_hbm [thread:$0]  %s836, 128, %s20, [#allocation4]
    $region145: #{tpu_custom_call.1} parent=1 // pred_fallthru
      _
    // Predicated region
    $region146: #{tpu_custom_call.1} parent=1 // pred_check
      _
    $region147: #{tpu_custom_call.1} parent=1 // pred_check_branch
      %840 = sbr.rel (0) target = $region149
    $region148: #{tpu_custom_call.1} parent=1 // pred_region
      %841 = dma.done [#allocation4], 128
    $region149: #{tpu_custom_call.1} parent=1 // pred_fallthru
      _
    %842 = vsyncpa [#allocation3], 1
    %843 = vsyncpa [#allocation6], 1
    %844 = vsyncpa [#allocation9], 1
    %845 = vsyncpa [#allocation12], 1
    %846 = vsyncpa [#allocation15], 1
    %847 = vsyncpa [#allocation18], 1
    %848 = vsyncpa [#allocation21], 1
    %849 = vsyncpa [#allocation24], 1
    %850 = vsyncpa [#allocation4], 1

</llo_original>
